<compile_context>
chip_gen: v7x
topology: tpu7x:2x2x1
jax: 0.10.0
libtpu: 0.0.40
codegen_flags: <defaults>
</compile_context>

<pallas_src>
import numpy as np
import jax
import jax.numpy as jnp
from jax import lax
from jax.experimental import pallas as pl
from jax.experimental.pallas import tpu as pltpu

C = 4            # channels (c)
H = 2            # attention heads
HC = C * H       # channels after q/k/v encoders
L = 16           # sequence length
B = 2            # batch
HID = 4 * C      # feed-forward hidden dim (depth_multiplier * c)
K_SMALL, K_LARGE = 3, 15
PAD = (K_LARGE - 1) // 2
EPS = 1e-5       # InstanceNorm1d eps

SEG = 64                     # lanes per batch segment (>= L + PAD)
LANES = B * SEG              # 128 — full vreg lane width

# parameter-slab layout (rows x cols = 96 x 40)
R_PW, R_DW, R_W1, R_WU, R_W2 = 0, 24, 48, 80, 88
CV = 32                      # first column of the bias/affine vectors
SLAB_ROWS, SLAB_COLS = 96, 40


def transformer_block_kernel(x_ref, p_ref, o_ref):
    x = x_ref[...]                                            # (C, 128) f32, zero-padded segments

    # ---- fused Q/K/V pointwise 1x1 convs (scale pre-folded into Q/K weights) ----
    pw = p_ref[R_PW:R_PW + 3 * HC, 0:C]                       # (24, 4)
    y = jnp.dot(pw, x, preferred_element_type=jnp.float32)    # (24, 128)

    # ---- gate-folded depthwise conv (15 taps), zero-padded 'same' via lane rolls ----
    # Wrap-around lanes always land in a zero-padded region (SEG - L = 48 >= PAD),
    # and attention below only reads lanes [b*SEG, b*SEG + L), so rolls are exact.
    dw = p_ref[R_DW:R_DW + 3 * HC, 0:K_LARGE]                 # (24, 15)
    z = dw[:, PAD:PAD + 1] * y                                # center tap, no shift
    for t in range(K_LARGE):
        if t == PAD:
            continue
        z = z + dw[:, t:t + 1] * pltpu.roll(y, shift=(PAD - t) % LANES, axis=1)
    # z rows: 0:HC queries (scaled), HC:2HC keys (scaled), 2HC:3HC values

    # ---- per-(batch, head) attention, batched over the leading dim ----
    q_t, k_t, v_t = [], [], []
    for b in range(B):
        for h in range(H):
            rs, cs = C * h, SEG * b
            q_t.append(z[rs:rs + C, cs:cs + L])
            k_t.append(z[HC + rs:HC + rs + C, cs:cs + L])
            v_t.append(z[2 * HC + rs:2 * HC + rs + C, cs:cs + L])
    q3 = jnp.stack(q_t)                                       # (B*H, C, L)
    k3 = jnp.stack(k_t)
    v3 = jnp.stack(v_t)

    s = jnp.einsum('bck,bcq->bkq', k3, q3,
                   preferred_element_type=jnp.float32)        # (B*H, L, L) = K^T Q
    s = s - jnp.max(s, axis=1, keepdims=True)
    e = jnp.exp(s)
    attn = e * pl.reciprocal(jnp.sum(e, axis=1, keepdims=True), approx=True)  # softmax over keys
    o3 = jnp.einsum('bck,bkq->bcq', v3, attn,
                    preferred_element_type=jnp.float32)       # (B*H, C, L)

    att2d = jnp.concatenate([o3[i] for i in range(B * H)], axis=0)   # (B*HC, L), rows (b, h, c)

    # ---- unify heads (block-diag over batch) + residual + InstanceNorm1d ----
    wu_b = p_ref[R_WU:R_WU + B * C, 0:B * HC]                 # (8, 16)
    bu = p_ref[0:B * C, CV + 0:CV + 1]
    attended = jnp.dot(wu_b, att2d, preferred_element_type=jnp.float32) + bu   # (B*C, L)

    x_bc = jnp.concatenate([x[:, SEG * b:SEG * b + L] for b in range(B)], axis=0)  # (B*C, L)

    def inorm(v, w, bvec):                                    # InstanceNorm1d (biased var)
        mu = jnp.mean(v, axis=1, keepdims=True)
        vc = v - mu
        var = jnp.mean(vc * vc, axis=1, keepdims=True)
        return vc * jax.lax.rsqrt(var + EPS) * w + bvec

    n1w = p_ref[0:B * C, CV + 1:CV + 2]
    n1b = p_ref[0:B * C, CV + 2:CV + 3]
    # TODO(synk): nn.Dropout2d is stochastic channel dropout in training mode; inference (identity) used.
    out1 = inorm(attended + x_bc, n1w, n1b)

    # ---- feed-forward (1x1 convs, block-diag over batch) + residual + InstanceNorm1d ----
    w1_b = p_ref[R_W1:R_W1 + B * HID, 0:B * C]                # (32, 8)
    b1 = p_ref[0:B * HID, CV + 3:CV + 4]
    hid = jnp.maximum(jnp.dot(w1_b, out1, preferred_element_type=jnp.float32) + b1, 0.0)
    w2_b = p_ref[R_W2:R_W2 + B * C, 0:B * HID]                # (8, 32)
    b2 = p_ref[0:B * C, CV + 4:CV + 5]
    ff = jnp.dot(w2_b, hid, preferred_element_type=jnp.float32) + b2
    n2w = p_ref[0:B * C, CV + 5:CV + 6]
    n2b = p_ref[0:B * C, CV + 6:CV + 7]
    out2 = inorm(ff + out1, n2w, n2b)                         # (B*C, L)

    # ---- lane-dense (1, B*C*L) output: dense[j] = out2[j // L, j % L] ----
    rep = jnp.tile(out2, (1, B * C))                          # (8, 128), rep[r, j] = out2[r, j % L]
    lane = lax.broadcasted_iota(jnp.int32, (B * C, B * C * L), 1)
    row = lax.broadcasted_iota(jnp.int32, (B * C, B * C * L), 0)
    sel = (lane >= row * L) & (lane < (row + 1) * L)
    o_ref[...] = jnp.sum(jnp.where(sel, rep, 0.0), axis=0, keepdims=True)


def pack_params(p):
    """One-time host-side parameter packing / folding into a single f32 slab."""
    scale = 1.0 / (C ** 0.25)
    pw = p['pw'] * jnp.array([scale, scale, 1.0], jnp.float32)[:, None, None]
    pw_all = pw.reshape(3 * HC, C)                                           # (24, 4)

    g = p['gate']                                                            # (3, 2), already softmaxed
    dw3p = jnp.pad(p['dw3'], ((0, 0), (0, 0), (PAD - 1, PAD - 1)))           # center 3-tap into 15 taps
    dw_all = (g[:, 0][:, None, None] * dw3p
              + g[:, 1][:, None, None] * p['dw15']).reshape(3 * HC, K_LARGE)  # (24, 15)

    def bdiag2(w):                                                           # block_diag(w, w)
        o, i = w.shape
        zz = jnp.zeros((o, i), w.dtype)
        return jnp.concatenate(
            [jnp.concatenate([w, zz], axis=1), jnp.concatenate([zz, w], axis=1)], axis=0)

    def tile_b(v):                                                           # (n,1) -> (B*n,1)
        return jnp.concatenate([v] * B, axis=0)

    slab = jnp.zeros((SLAB_ROWS, SLAB_COLS), jnp.float32)
    slab = slab.at[R_PW:R_PW + 3 * HC, 0:C].set(pw_all)
    slab = slab.at[R_DW:R_DW + 3 * HC, 0:K_LARGE].set(dw_all)
    slab = slab.at[R_W1:R_W1 + B * HID, 0:B * C].set(bdiag2(p['w1']))
    slab = slab.at[R_WU:R_WU + B * C, 0:B * HC].set(bdiag2(p['wu']))
    slab = slab.at[R_W2:R_W2 + B * C, 0:B * HID].set(bdiag2(p['w2']))
    slab = slab.at[0:B * C, CV + 0:CV + 1].set(tile_b(p['bu']))
    slab = slab.at[0:B * C, CV + 1:CV + 2].set(tile_b(p['n1w']))
    slab = slab.at[0:B * C, CV + 2:CV + 3].set(tile_b(p['n1b']))
    slab = slab.at[0:B * HID, CV + 3:CV + 4].set(tile_b(p['b1']))
    slab = slab.at[0:B * C, CV + 4:CV + 5].set(tile_b(p['b2']))
    slab = slab.at[0:B * C, CV + 5:CV + 6].set(tile_b(p['n2w']))
    slab = slab.at[0:B * C, CV + 6:CV + 7].set(tile_b(p['n2b']))
    return {'slab': slab}


@jax.jit
def ddsct_block(q, packed):
    Bq, Cq, Lq = q.shape
    # lane-dense, zero-padded input slab: (C, B*SEG) with batch b at lanes [b*SEG, b*SEG + L)
    xp = jnp.pad(jnp.transpose(q, (1, 0, 2)).astype(jnp.float32),
                 ((0, 0), (0, 0), (0, SEG - Lq))).reshape(Cq, Bq * SEG)
    slab = packed['slab']
    out = pl.pallas_call(
        transformer_block_kernel,
        out_shape=jax.ShapeDtypeStruct((1, Bq * Cq * Lq), jnp.float32),
        grid=(1,),
        in_specs=[
            pl.BlockSpec((Cq, Bq * SEG), lambda i: (0, 0)),
            pl.BlockSpec((SLAB_ROWS, SLAB_COLS), lambda i: (0, 0)),
        ],
        out_specs=pl.BlockSpec((1, Bq * Cq * Lq), lambda i: (0, 0)),
        compiler_params=pltpu.CompilerParams(dimension_semantics=("arbitrary",)),
    )(xp, slab)
    return out.reshape(Bq, Cq, Lq)


def init_params(key):
    keys = jax.random.split(key, 16)
    r = lambda k, s, sc=0.25: jax.random.normal(k, s, jnp.float32) * sc
    gate_raw = r(keys[0], (3, 2), 1.0)                      # dynamic_gate per q/k/v encoder
    return dict(
        pw=r(keys[1], (3, HC, C)),                          # pointwise Conv1d(c, c*h, 1), no bias
        dw3=r(keys[2], (3, HC, K_SMALL)),                   # depthwise Conv1d k=3, groups=c*h
        dw15=r(keys[3], (3, HC, K_LARGE)),                  # depthwise Conv1d k=15
        gate=jax.nn.softmax(gate_raw, axis=-1),             # softmax(dynamic_gate)
        wu=r(keys[4], (C, HC)),                             # unify_heads Conv1d(h*c, c, 1)
        bu=r(keys[5], (C, 1), 0.1),
        n1w=1.0 + r(keys[6], (C, 1), 0.1),                  # InstanceNorm1d affine
        n1b=r(keys[7], (C, 1), 0.1),
        w1=r(keys[8], (HID, C)),                            # FFN Conv1d(c, 4c, 1)
        b1=r(keys[9], (HID, 1), 0.1),
        w2=r(keys[10], (C, HID)),                           # FFN Conv1d(4c, c, 1)
        b2=r(keys[11], (C, 1), 0.1),
        n2w=1.0 + r(keys[12], (C, 1), 0.1),
        n2b=r(keys[13], (C, 1), 0.1),
    )


def _reference(qnp, p):
    """Pure numpy float64 reference replicating the PyTorch forward (eval mode)."""
    Bq, Cq, Lq = qnp.shape
    HCq = p['pw'].shape[1]
    Hq = HCq // Cq

    def dds(xb, i):
        y = p['pw'][i] @ xb

        def dw(w, k):
            pad = (k - 1) // 2
            yp = np.pad(y, ((0, 0), (pad, pad)))
            out = np.zeros((HCq, Lq))
            for t in range(k):
                out += w[:, t:t + 1] * yp[:, t:t + Lq]
            return out

        return p['gate'][i, 0] * dw(p['dw3'][i], K_SMALL) + p['gate'][i, 1] * dw(p['dw15'][i], K_LARGE)

    def inorm(x, w, b):
        mu = x.mean(axis=1, keepdims=True)
        var = ((x - mu) ** 2).mean(axis=1, keepdims=True)
        return (x - mu) / np.sqrt(var + EPS) * w + b

    outs = []
    for bi in range(Bq):
        x = qnp[bi]
        Q = dds(x, 0) / Cq ** 0.25
        Kk = dds(x, 1) / Cq ** 0.25
        V = dds(x, 2)
        heads = []
        for hh in range(Hq):
            dot = Kk[hh * Cq:(hh + 1) * Cq].T @ Q[hh * Cq:(hh + 1) * Cq]
            dot = dot - dot.max(axis=0, keepdims=True)
            e = np.exp(dot)
            attn = e / e.sum(axis=0, keepdims=True)
            heads.append(V[hh * Cq:(hh + 1) * Cq] @ attn)
        att = p['wu'] @ np.concatenate(heads, 0) + p['bu']
        o1 = inorm(att + x, p['n1w'], p['n1b'])
        hid = np.maximum(p['w1'] @ o1 + p['b1'], 0.0)
        ff = p['w2'] @ hid + p['b2']
        outs.append(inorm(ff + o1, p['n2w'], p['n2b']))
    return np.stack(outs)


if __name__ == "__main__":
    key = jax.random.PRNGKey(0)
    kq, kp = jax.random.split(key)
    q = jax.random.normal(kq, (B, C, L), jnp.float32)
    params = init_params(kp)
    packed = pack_params(params)

    out = jax.block_until_ready(ddsct_block(q, packed))

    ref = _reference(np.asarray(q, np.float64),
                     {k: np.asarray(v, np.float64) for k, v in params.items()})
    np.testing.assert_allclose(np.asarray(out, np.float64), ref, rtol=3e-3, atol=3e-3)
    print("KERNEL_OK")
</pallas_src>

<mosaic_0001>
module attributes {stable_mosaic.version = 11 : i64} {
  func.func @transformer_block_kernel(%arg0: i32, %arg1: memref<4x128xf32, #tpu.memory_space<vmem>>, %arg2: memref<96x40xf32, #tpu.memory_space<vmem>>, %arg3: memref<1x128xf32, #tpu.memory_space<vmem>>) attributes {dimension_semantics = [#tpu.dimension_semantics<arbitrary>], iteration_bounds = array<i64: 1>, scalar_prefetch = 0 : i64, scratch_operands = 0 : i64, tpu.core_type = #tpu.core_type<tc>, window_params = [{pipeline_mode = #tpu.pipeline_mode<synchronous>, transform_indices = @transform_0, window_bounds = array<i64: 4, 128>}, {pipeline_mode = #tpu.pipeline_mode<synchronous>, transform_indices = @transform_1, window_bounds = array<i64: 96, 40>}, {pipeline_mode = #tpu.pipeline_mode<synchronous>, transform_indices = @transform_2, window_bounds = array<i64: 1, 128>}]} {
    %c0 = arith.constant 0 : index
    %c0_0 = arith.constant 0 : index
    %0 = vector.load %arg1[%c0, %c0_0] : memref<4x128xf32, #tpu.memory_space<vmem>>, vector<4x128xf32>
    %c0_1 = arith.constant 0 : index
    %c0_2 = arith.constant 0 : index
    %1 = vector.load %arg2[%c0_1, %c0_2] : memref<96x40xf32, #tpu.memory_space<vmem>>, vector<24x4xf32>
    %cst = arith.constant dense<0.000000e+00> : vector<24x128xf32>
    %2 = tpu.matmul %1, %0, %cst {dimension_numbers = #tpu.dot_dimension_numbers<[1], [0], [0], [1], [0, 0, 1, 1], [], []>} : vector<24x4xf32>, vector<4x128xf32>, vector<24x128xf32> -> vector<24x128xf32>
    %c24 = arith.constant 24 : index
    %c0_3 = arith.constant 0 : index
    %3 = vector.load %arg2[%c24, %c0_3] : memref<96x40xf32, #tpu.memory_space<vmem>>, vector<24x15xf32>
    %4 = vector.extract_strided_slice %3 {offsets = [0, 7], sizes = [24, 1], strides = [1, 1]} : vector<24x15xf32> to vector<24x1xf32>
    %5 = vector.broadcast %4 : vector<24x1xf32> to vector<24x128xf32>
    %6 = arith.mulf %5, %2 : vector<24x128xf32>
    %7 = vector.extract_strided_slice %3 {offsets = [0, 0], sizes = [24, 1], strides = [1, 1]} : vector<24x15xf32> to vector<24x1xf32>
    %c7_i32 = arith.constant 7 : i32
    %8 = tpu.dynamic_rotate %2 by %c7_i32 dim 1 : vector<24x128xf32>, i32 -> vector<24x128xf32>
    %9 = vector.broadcast %7 : vector<24x1xf32> to vector<24x128xf32>
    %10 = arith.mulf %9, %8 : vector<24x128xf32>
    %11 = arith.addf %6, %10 : vector<24x128xf32>
    %12 = vector.extract_strided_slice %3 {offsets = [0, 1], sizes = [24, 1], strides = [1, 1]} : vector<24x15xf32> to vector<24x1xf32>
    %c6_i32 = arith.constant 6 : i32
    %13 = tpu.dynamic_rotate %2 by %c6_i32 dim 1 : vector<24x128xf32>, i32 -> vector<24x128xf32>
    %14 = vector.broadcast %12 : vector<24x1xf32> to vector<24x128xf32>
    %15 = arith.mulf %14, %13 : vector<24x128xf32>
    %16 = arith.addf %11, %15 : vector<24x128xf32>
    %17 = vector.extract_strided_slice %3 {offsets = [0, 2], sizes = [24, 1], strides = [1, 1]} : vector<24x15xf32> to vector<24x1xf32>
    %c5_i32 = arith.constant 5 : i32
    %18 = tpu.dynamic_rotate %2 by %c5_i32 dim 1 : vector<24x128xf32>, i32 -> vector<24x128xf32>
    %19 = vector.broadcast %17 : vector<24x1xf32> to vector<24x128xf32>
    %20 = arith.mulf %19, %18 : vector<24x128xf32>
    %21 = arith.addf %16, %20 : vector<24x128xf32>
    %22 = vector.extract_strided_slice %3 {offsets = [0, 3], sizes = [24, 1], strides = [1, 1]} : vector<24x15xf32> to vector<24x1xf32>
    %c4_i32 = arith.constant 4 : i32
    %23 = tpu.dynamic_rotate %2 by %c4_i32 dim 1 : vector<24x128xf32>, i32 -> vector<24x128xf32>
    %24 = vector.broadcast %22 : vector<24x1xf32> to vector<24x128xf32>
    %25 = arith.mulf %24, %23 : vector<24x128xf32>
    %26 = arith.addf %21, %25 : vector<24x128xf32>
    %27 = vector.extract_strided_slice %3 {offsets = [0, 4], sizes = [24, 1], strides = [1, 1]} : vector<24x15xf32> to vector<24x1xf32>
    %c3_i32 = arith.constant 3 : i32
    %28 = tpu.dynamic_rotate %2 by %c3_i32 dim 1 : vector<24x128xf32>, i32 -> vector<24x128xf32>
    %29 = vector.broadcast %27 : vector<24x1xf32> to vector<24x128xf32>
    %30 = arith.mulf %29, %28 : vector<24x128xf32>
    %31 = arith.addf %26, %30 : vector<24x128xf32>
    %32 = vector.extract_strided_slice %3 {offsets = [0, 5], sizes = [24, 1], strides = [1, 1]} : vector<24x15xf32> to vector<24x1xf32>
    %c2_i32 = arith.constant 2 : i32
    %33 = tpu.dynamic_rotate %2 by %c2_i32 dim 1 : vector<24x128xf32>, i32 -> vector<24x128xf32>
    %34 = vector.broadcast %32 : vector<24x1xf32> to vector<24x128xf32>
    %35 = arith.mulf %34, %33 : vector<24x128xf32>
    %36 = arith.addf %31, %35 : vector<24x128xf32>
    %37 = vector.extract_strided_slice %3 {offsets = [0, 6], sizes = [24, 1], strides = [1, 1]} : vector<24x15xf32> to vector<24x1xf32>
    %c1_i32 = arith.constant 1 : i32
    %38 = tpu.dynamic_rotate %2 by %c1_i32 dim 1 : vector<24x128xf32>, i32 -> vector<24x128xf32>
    %39 = vector.broadcast %37 : vector<24x1xf32> to vector<24x128xf32>
    %40 = arith.mulf %39, %38 : vector<24x128xf32>
    %41 = arith.addf %36, %40 : vector<24x128xf32>
    %42 = vector.extract_strided_slice %3 {offsets = [0, 8], sizes = [24, 1], strides = [1, 1]} : vector<24x15xf32> to vector<24x1xf32>
    %c127_i32 = arith.constant 127 : i32
    %43 = tpu.dynamic_rotate %2 by %c127_i32 dim 1 : vector<24x128xf32>, i32 -> vector<24x128xf32>
    %44 = vector.broadcast %42 : vector<24x1xf32> to vector<24x128xf32>
    %45 = arith.mulf %44, %43 : vector<24x128xf32>
    %46 = arith.addf %41, %45 : vector<24x128xf32>
    %47 = vector.extract_strided_slice %3 {offsets = [0, 9], sizes = [24, 1], strides = [1, 1]} : vector<24x15xf32> to vector<24x1xf32>
    %c126_i32 = arith.constant 126 : i32
    %48 = tpu.dynamic_rotate %2 by %c126_i32 dim 1 : vector<24x128xf32>, i32 -> vector<24x128xf32>
    %49 = vector.broadcast %47 : vector<24x1xf32> to vector<24x128xf32>
    %50 = arith.mulf %49, %48 : vector<24x128xf32>
    %51 = arith.addf %46, %50 : vector<24x128xf32>
    %52 = vector.extract_strided_slice %3 {offsets = [0, 10], sizes = [24, 1], strides = [1, 1]} : vector<24x15xf32> to vector<24x1xf32>
    %c125_i32 = arith.constant 125 : i32
    %53 = tpu.dynamic_rotate %2 by %c125_i32 dim 1 : vector<24x128xf32>, i32 -> vector<24x128xf32>
    %54 = vector.broadcast %52 : vector<24x1xf32> to vector<24x128xf32>
    %55 = arith.mulf %54, %53 : vector<24x128xf32>
    %56 = arith.addf %51, %55 : vector<24x128xf32>
    %57 = vector.extract_strided_slice %3 {offsets = [0, 11], sizes = [24, 1], strides = [1, 1]} : vector<24x15xf32> to vector<24x1xf32>
    %c124_i32 = arith.constant 124 : i32
    %58 = tpu.dynamic_rotate %2 by %c124_i32 dim 1 : vector<24x128xf32>, i32 -> vector<24x128xf32>
    %59 = vector.broadcast %57 : vector<24x1xf32> to vector<24x128xf32>
    %60 = arith.mulf %59, %58 : vector<24x128xf32>
    %61 = arith.addf %56, %60 : vector<24x128xf32>
    %62 = vector.extract_strided_slice %3 {offsets = [0, 12], sizes = [24, 1], strides = [1, 1]} : vector<24x15xf32> to vector<24x1xf32>
    %c123_i32 = arith.constant 123 : i32
    %63 = tpu.dynamic_rotate %2 by %c123_i32 dim 1 : vector<24x128xf32>, i32 -> vector<24x128xf32>
    %64 = vector.broadcast %62 : vector<24x1xf32> to vector<24x128xf32>
    %65 = arith.mulf %64, %63 : vector<24x128xf32>
    %66 = arith.addf %61, %65 : vector<24x128xf32>
    %67 = vector.extract_strided_slice %3 {offsets = [0, 13], sizes = [24, 1], strides = [1, 1]} : vector<24x15xf32> to vector<24x1xf32>
    %c122_i32 = arith.constant 122 : i32
    %68 = tpu.dynamic_rotate %2 by %c122_i32 dim 1 : vector<24x128xf32>, i32 -> vector<24x128xf32>
    %69 = vector.broadcast %67 : vector<24x1xf32> to vector<24x128xf32>
    %70 = arith.mulf %69, %68 : vector<24x128xf32>
    %71 = arith.addf %66, %70 : vector<24x128xf32>
    %72 = vector.extract_strided_slice %3 {offsets = [0, 14], sizes = [24, 1], strides = [1, 1]} : vector<24x15xf32> to vector<24x1xf32>
    %c121_i32 = arith.constant 121 : i32
    %73 = tpu.dynamic_rotate %2 by %c121_i32 dim 1 : vector<24x128xf32>, i32 -> vector<24x128xf32>
    %74 = vector.broadcast %72 : vector<24x1xf32> to vector<24x128xf32>
    %75 = arith.mulf %74, %73 : vector<24x128xf32>
    %76 = arith.addf %71, %75 : vector<24x128xf32>
    %77 = vector.extract_strided_slice %76 {offsets = [0, 0], sizes = [4, 16], strides = [1, 1]} : vector<24x128xf32> to vector<4x16xf32>
    %78 = vector.extract_strided_slice %76 {offsets = [8, 0], sizes = [4, 16], strides = [1, 1]} : vector<24x128xf32> to vector<4x16xf32>
    %79 = vector.extract_strided_slice %76 {offsets = [16, 0], sizes = [4, 16], strides = [1, 1]} : vector<24x128xf32> to vector<4x16xf32>
    %80 = vector.extract_strided_slice %76 {offsets = [4, 0], sizes = [4, 16], strides = [1, 1]} : vector<24x128xf32> to vector<4x16xf32>
    %81 = vector.extract_strided_slice %76 {offsets = [12, 0], sizes = [4, 16], strides = [1, 1]} : vector<24x128xf32> to vector<4x16xf32>
    %82 = vector.extract_strided_slice %76 {offsets = [20, 0], sizes = [4, 16], strides = [1, 1]} : vector<24x128xf32> to vector<4x16xf32>
    %83 = vector.extract_strided_slice %76 {offsets = [0, 64], sizes = [4, 16], strides = [1, 1]} : vector<24x128xf32> to vector<4x16xf32>
    %84 = vector.extract_strided_slice %76 {offsets = [8, 64], sizes = [4, 16], strides = [1, 1]} : vector<24x128xf32> to vector<4x16xf32>
    %85 = vector.extract_strided_slice %76 {offsets = [16, 64], sizes = [4, 16], strides = [1, 1]} : vector<24x128xf32> to vector<4x16xf32>
    %86 = vector.extract_strided_slice %76 {offsets = [4, 64], sizes = [4, 16], strides = [1, 1]} : vector<24x128xf32> to vector<4x16xf32>
    %87 = vector.extract_strided_slice %76 {offsets = [12, 64], sizes = [4, 16], strides = [1, 1]} : vector<24x128xf32> to vector<4x16xf32>
    %88 = vector.extract_strided_slice %76 {offsets = [20, 64], sizes = [4, 16], strides = [1, 1]} : vector<24x128xf32> to vector<4x16xf32>
    %89 = vector.shape_cast %77 : vector<4x16xf32> to vector<1x4x16xf32>
    %90 = vector.shape_cast %80 : vector<4x16xf32> to vector<1x4x16xf32>
    %91 = vector.shape_cast %83 : vector<4x16xf32> to vector<1x4x16xf32>
    %92 = vector.shape_cast %86 : vector<4x16xf32> to vector<1x4x16xf32>
    %93 = tpu.concatenate %89, %90, %91, %92 in 0 : vector<1x4x16xf32>, vector<1x4x16xf32>, vector<1x4x16xf32>, vector<1x4x16xf32> -> vector<4x4x16xf32>
    %94 = vector.shape_cast %78 : vector<4x16xf32> to vector<1x4x16xf32>
    %95 = vector.shape_cast %81 : vector<4x16xf32> to vector<1x4x16xf32>
    %96 = vector.shape_cast %84 : vector<4x16xf32> to vector<1x4x16xf32>
    %97 = vector.shape_cast %87 : vector<4x16xf32> to vector<1x4x16xf32>
    %98 = tpu.concatenate %94, %95, %96, %97 in 0 : vector<1x4x16xf32>, vector<1x4x16xf32>, vector<1x4x16xf32>, vector<1x4x16xf32> -> vector<4x4x16xf32>
    %99 = vector.shape_cast %79 : vector<4x16xf32> to vector<1x4x16xf32>
    %100 = vector.shape_cast %82 : vector<4x16xf32> to vector<1x4x16xf32>
    %101 = vector.shape_cast %85 : vector<4x16xf32> to vector<1x4x16xf32>
    %102 = vector.shape_cast %88 : vector<4x16xf32> to vector<1x4x16xf32>
    %103 = tpu.concatenate %99, %100, %101, %102 in 0 : vector<1x4x16xf32>, vector<1x4x16xf32>, vector<1x4x16xf32>, vector<1x4x16xf32> -> vector<4x4x16xf32>
    "tpu.trace_start"() <{level = 10 : i32, message = "bck,bcq->bkq"}> : () -> ()
    %cst_4 = arith.constant dense<0.000000e+00> : vector<4x16x16xf32>
    %104 = tpu.matmul %98, %93, %cst_4 {dimension_numbers = #tpu.dot_dimension_numbers<[1], [1], [2], [2], [0, 0, 0, 2, 1, 2], [0], [0]>} : vector<4x4x16xf32>, vector<4x4x16xf32>, vector<4x16x16xf32> -> vector<4x16x16xf32>
    "tpu.trace_stop"() : () -> ()
    %cst_5 = arith.constant dense<0xFF800000> : vector<4x16xf32>
    %105 = vector.multi_reduction <maximumf>, %104, %cst_5 [1] : vector<4x16x16xf32> to vector<4x16xf32>
    %106 = vector.shape_cast %105 : vector<4x16xf32> to vector<4x1x16xf32>
    %107 = vector.broadcast %106 : vector<4x1x16xf32> to vector<4x16x16xf32>
    %108 = arith.subf %104, %107 : vector<4x16x16xf32>
    %109 = math.exp %108 : vector<4x16x16xf32>
    %cst_6 = arith.constant dense<0.000000e+00> : vector<4x16xf32>
    %110 = vector.multi_reduction <add>, %109, %cst_6 [1] : vector<4x16x16xf32> to vector<4x16xf32>
    %111 = vector.shape_cast %110 : vector<4x16xf32> to vector<4x1x16xf32>
    %112 = tpu.reciprocal %111 {approx = true} : vector<4x1x16xf32> -> vector<4x1x16xf32>
    %113 = vector.broadcast %112 : vector<4x1x16xf32> to vector<4x16x16xf32>
    %114 = arith.mulf %109, %113 : vector<4x16x16xf32>
    "tpu.trace_start"() <{level = 10 : i32, message = "bck,bkq->bcq"}> : () -> ()
    %cst_7 = arith.constant dense<0.000000e+00> : vector<4x4x16xf32>
    %115 = tpu.matmul %103, %114, %cst_7 {dimension_numbers = #tpu.dot_dimension_numbers<[2], [1], [1], [2], [0, 0, 0, 1, 1, 2], [0], [0]>} : vector<4x4x16xf32>, vector<4x16x16xf32>, vector<4x4x16xf32> -> vector<4x4x16xf32>
    "tpu.trace_stop"() : () -> ()
    %116 = vector.extract_strided_slice %115 {offsets = [0, 0, 0], sizes = [1, 4, 16], strides = [1, 1, 1]} : vector<4x4x16xf32> to vector<1x4x16xf32>
    %117 = vector.shape_cast %116 : vector<1x4x16xf32> to vector<4x16xf32>
    %118 = vector.extract_strided_slice %115 {offsets = [1, 0, 0], sizes = [1, 4, 16], strides = [1, 1, 1]} : vector<4x4x16xf32> to vector<1x4x16xf32>
    %119 = vector.shape_cast %118 : vector<1x4x16xf32> to vector<4x16xf32>
    %120 = vector.extract_strided_slice %115 {offsets = [2, 0, 0], sizes = [1, 4, 16], strides = [1, 1, 1]} : vector<4x4x16xf32> to vector<1x4x16xf32>
    %121 = vector.shape_cast %120 : vector<1x4x16xf32> to vector<4x16xf32>
    %122 = vector.extract_strided_slice %115 {offsets = [3, 0, 0], sizes = [1, 4, 16], strides = [1, 1, 1]} : vector<4x4x16xf32> to vector<1x4x16xf32>
    %123 = vector.shape_cast %122 : vector<1x4x16xf32> to vector<4x16xf32>
    %124 = tpu.concatenate %117, %119, %121, %123 in 0 : vector<4x16xf32>, vector<4x16xf32>, vector<4x16xf32>, vector<4x16xf32> -> vector<16x16xf32>
    %c80 = arith.constant 80 : index
    %c0_8 = arith.constant 0 : index
    %125 = vector.load %arg2[%c80, %c0_8] : memref<96x40xf32, #tpu.memory_space<vmem>>, vector<8x16xf32>
    %c0_9 = arith.constant 0 : index
    %c32 = arith.constant 32 : index
    %126 = vector.load %arg2[%c0_9, %c32] : memref<96x40xf32, #tpu.memory_space<vmem>>, vector<8x1xf32>
    %cst_10 = arith.constant dense<0.000000e+00> : vector<8x16xf32>
    %127 = tpu.matmul %125, %124, %cst_10 {dimension_numbers = #tpu.dot_dimension_numbers<[1], [0], [0], [1], [0, 0, 1, 1], [], []>} : vector<8x16xf32>, vector<16x16xf32>, vector<8x16xf32> -> vector<8x16xf32>
    %128 = vector.broadcast %126 : vector<8x1xf32> to vector<8x16xf32>
    %129 = arith.addf %127, %128 : vector<8x16xf32>
    %130 = vector.extract_strided_slice %0 {offsets = [0, 0], sizes = [4, 16], strides = [1, 1]} : vector<4x128xf32> to vector<4x16xf32>
    %131 = vector.extract_strided_slice %0 {offsets = [0, 64], sizes = [4, 16], strides = [1, 1]} : vector<4x128xf32> to vector<4x16xf32>
    %132 = tpu.concatenate %130, %131 in 0 : vector<4x16xf32>, vector<4x16xf32> -> vector<8x16xf32>
    %c0_11 = arith.constant 0 : index
    %c33 = arith.constant 33 : index
    %133 = vector.load %arg2[%c0_11, %c33] : memref<96x40xf32, #tpu.memory_space<vmem>>, vector<8x1xf32>
    %c0_12 = arith.constant 0 : index
    %c34 = arith.constant 34 : index
    %134 = vector.load %arg2[%c0_12, %c34] : memref<96x40xf32, #tpu.memory_space<vmem>>, vector<8x1xf32>
    %135 = arith.addf %129, %132 : vector<8x16xf32>
    %cst_13 = arith.constant dense<0.000000e+00> : vector<8xf32>
    %136 = vector.multi_reduction <add>, %135, %cst_13 [1] : vector<8x16xf32> to vector<8xf32>
    %137 = vector.shape_cast %136 : vector<8xf32> to vector<8x1xf32>
    %cst_14 = arith.constant 1.600000e+01 : f32
    %138 = vector.broadcast %cst_14 : f32 to vector<8x1xf32>
    %139 = arith.divf %137, %138 : vector<8x1xf32>
    %140 = vector.broadcast %139 : vector<8x1xf32> to vector<8x16xf32>
    %141 = arith.subf %135, %140 : vector<8x16xf32>
    %142 = arith.mulf %141, %141 : vector<8x16xf32>
    %cst_15 = arith.constant dense<0.000000e+00> : vector<8xf32>
    %143 = vector.multi_reduction <add>, %142, %cst_15 [1] : vector<8x16xf32> to vector<8xf32>
    %144 = vector.shape_cast %143 : vector<8xf32> to vector<8x1xf32>
    %cst_16 = arith.constant 1.600000e+01 : f32
    %145 = vector.broadcast %cst_16 : f32 to vector<8x1xf32>
    %146 = arith.divf %144, %145 : vector<8x1xf32>
    %cst_17 = arith.constant 9.99999974E-6 : f32
    %147 = vector.broadcast %cst_17 : f32 to vector<8x1xf32>
    %148 = arith.addf %146, %147 : vector<8x1xf32>
    %149 = math.rsqrt %148 : vector<8x1xf32>
    %150 = vector.broadcast %149 : vector<8x1xf32> to vector<8x16xf32>
    %151 = arith.mulf %141, %150 : vector<8x16xf32>
    %152 = vector.broadcast %133 : vector<8x1xf32> to vector<8x16xf32>
    %153 = arith.mulf %151, %152 : vector<8x16xf32>
    %154 = vector.broadcast %134 : vector<8x1xf32> to vector<8x16xf32>
    %155 = arith.addf %153, %154 : vector<8x16xf32>
    %c48 = arith.constant 48 : index
    %c0_18 = arith.constant 0 : index
    %156 = vector.load %arg2[%c48, %c0_18] : memref<96x40xf32, #tpu.memory_space<vmem>>, vector<32x8xf32>
    %c0_19 = arith.constant 0 : index
    %c35 = arith.constant 35 : index
    %157 = vector.load %arg2[%c0_19, %c35] : memref<96x40xf32, #tpu.memory_space<vmem>>, vector<32x1xf32>
    %cst_20 = arith.constant dense<0.000000e+00> : vector<32x16xf32>
    %158 = tpu.matmul %156, %155, %cst_20 {dimension_numbers = #tpu.dot_dimension_numbers<[1], [0], [0], [1], [0, 0, 1, 1], [], []>} : vector<32x8xf32>, vector<8x16xf32>, vector<32x16xf32> -> vector<32x16xf32>
    %159 = vector.broadcast %157 : vector<32x1xf32> to vector<32x16xf32>
    %160 = arith.addf %158, %159 : vector<32x16xf32>
    %cst_21 = arith.constant 0.000000e+00 : f32
    %161 = vector.broadcast %cst_21 : f32 to vector<32x16xf32>
    %162 = arith.maximumf %160, %161 : vector<32x16xf32>
    %c88 = arith.constant 88 : index
    %c0_22 = arith.constant 0 : index
    %163 = vector.load %arg2[%c88, %c0_22] : memref<96x40xf32, #tpu.memory_space<vmem>>, vector<8x32xf32>
    %c0_23 = arith.constant 0 : index
    %c36 = arith.constant 36 : index
    %164 = vector.load %arg2[%c0_23, %c36] : memref<96x40xf32, #tpu.memory_space<vmem>>, vector<8x1xf32>
    %cst_24 = arith.constant dense<0.000000e+00> : vector<8x16xf32>
    %165 = tpu.matmul %163, %162, %cst_24 {dimension_numbers = #tpu.dot_dimension_numbers<[1], [0], [0], [1], [0, 0, 1, 1], [], []>} : vector<8x32xf32>, vector<32x16xf32>, vector<8x16xf32> -> vector<8x16xf32>
    %166 = vector.broadcast %164 : vector<8x1xf32> to vector<8x16xf32>
    %167 = arith.addf %165, %166 : vector<8x16xf32>
    %c0_25 = arith.constant 0 : index
    %c37 = arith.constant 37 : index
    %168 = vector.load %arg2[%c0_25, %c37] : memref<96x40xf32, #tpu.memory_space<vmem>>, vector<8x1xf32>
    %c0_26 = arith.constant 0 : index
    %c38 = arith.constant 38 : index
    %169 = vector.load %arg2[%c0_26, %c38] : memref<96x40xf32, #tpu.memory_space<vmem>>, vector<8x1xf32>
    %170 = arith.addf %167, %155 : vector<8x16xf32>
    %cst_27 = arith.constant dense<0.000000e+00> : vector<8xf32>
    %171 = vector.multi_reduction <add>, %170, %cst_27 [1] : vector<8x16xf32> to vector<8xf32>
    %172 = vector.shape_cast %171 : vector<8xf32> to vector<8x1xf32>
    %cst_28 = arith.constant 1.600000e+01 : f32
    %173 = vector.broadcast %cst_28 : f32 to vector<8x1xf32>
    %174 = arith.divf %172, %173 : vector<8x1xf32>
    %175 = vector.broadcast %174 : vector<8x1xf32> to vector<8x16xf32>
    %176 = arith.subf %170, %175 : vector<8x16xf32>
    %177 = arith.mulf %176, %176 : vector<8x16xf32>
    %cst_29 = arith.constant dense<0.000000e+00> : vector<8xf32>
    %178 = vector.multi_reduction <add>, %177, %cst_29 [1] : vector<8x16xf32> to vector<8xf32>
    %179 = vector.shape_cast %178 : vector<8xf32> to vector<8x1xf32>
    %cst_30 = arith.constant 1.600000e+01 : f32
    %180 = vector.broadcast %cst_30 : f32 to vector<8x1xf32>
    %181 = arith.divf %179, %180 : vector<8x1xf32>
    %cst_31 = arith.constant 9.99999974E-6 : f32
    %182 = vector.broadcast %cst_31 : f32 to vector<8x1xf32>
    %183 = arith.addf %181, %182 : vector<8x1xf32>
    %184 = math.rsqrt %183 : vector<8x1xf32>
    %185 = vector.broadcast %184 : vector<8x1xf32> to vector<8x16xf32>
    %186 = arith.mulf %176, %185 : vector<8x16xf32>
    %187 = vector.broadcast %168 : vector<8x1xf32> to vector<8x16xf32>
    %188 = arith.mulf %186, %187 : vector<8x16xf32>
    %189 = vector.broadcast %169 : vector<8x1xf32> to vector<8x16xf32>
    %190 = arith.addf %188, %189 : vector<8x16xf32>
    %191 = tpu.concatenate %190, %190, %190, %190, %190, %190, %190, %190 in 1 : vector<8x16xf32>, vector<8x16xf32>, vector<8x16xf32>, vector<8x16xf32>, vector<8x16xf32>, vector<8x16xf32>, vector<8x16xf32>, vector<8x16xf32> -> vector<8x128xf32>
    %192 = tpu.iota {dimensions = array<i32: 1>} : vector<8x128xi32>
    %193 = tpu.iota {dimensions = array<i32: 0>} : vector<8x128xi32>
    %c16_i32 = arith.constant 16 : i32
    %194 = vector.broadcast %c16_i32 : i32 to vector<8x128xi32>
    %195 = arith.muli %193, %194 : vector<8x128xi32>
    %196 = arith.cmpi sge, %192, %195 : vector<8x128xi32>
    %c1_i32_32 = arith.constant 1 : i32
    %197 = vector.broadcast %c1_i32_32 : i32 to vector<8x128xi32>
    %198 = arith.addi %193, %197 : vector<8x128xi32>
    %c16_i32_33 = arith.constant 16 : i32
    %199 = vector.broadcast %c16_i32_33 : i32 to vector<8x128xi32>
    %200 = arith.muli %198, %199 : vector<8x128xi32>
    %201 = arith.cmpi slt, %192, %200 : vector<8x128xi32>
    %202 = arith.andi %196, %201 : vector<8x128xi1>
    %cst_34 = arith.constant 0.000000e+00 : f32
    %203 = vector.broadcast %cst_34 : f32 to vector<8x128xf32>
    %204 = arith.select %202, %191, %203 : vector<8x128xi1>, vector<8x128xf32>
    %cst_35 = arith.constant dense<0.000000e+00> : vector<128xf32>
    %205 = vector.multi_reduction <add>, %204, %cst_35 [0] : vector<8x128xf32> to vector<128xf32>
    %206 = vector.shape_cast %205 : vector<128xf32> to vector<1x128xf32>
    %c0_36 = arith.constant 0 : index
    %c0_37 = arith.constant 0 : index
    %207 = vector.load %arg3[%c0_36, %c0_37] : memref<1x128xf32, #tpu.memory_space<vmem>>, vector<1x128xf32>
    tpu.vector_store %arg3[%c0_36, %c0_37], %206 {strides = array<i32>} : memref<1x128xf32, #tpu.memory_space<vmem>>, vector<1x128xf32>,
    return
  }
  func.func @transform_0(%arg0: i32) -> (i32, i32) {
    %c0_i32 = arith.constant 0 : i32
    %c0_i32_0 = arith.constant 0 : i32
    %c0_i32_1 = arith.constant 0 : i32
    return %c0_i32, %c0_i32_0 : i32, i32
  }
  func.func @transform_1(%arg0: i32) -> (i32, i32) {
    %c0_i32 = arith.constant 0 : i32
    %c0_i32_0 = arith.constant 0 : i32
    %c0_i32_1 = arith.constant 0 : i32
    return %c0_i32, %c0_i32_0 : i32, i32
  }
  func.func @transform_2(%arg0: i32) -> (i32, i32) {
    %c0_i32 = arith.constant 0 : i32
    %c0_i32_0 = arith.constant 0 : i32
    %c0_i32_1 = arith.constant 0 : i32
    return %c0_i32, %c0_i32_0 : i32, i32
  }
}

</mosaic_0001>

<llo_original>
// kernel: ddsct_block.1
$region0: #{ddsct_block.1}
  #allocation0 [shape = 'u32[]', space=smem, size = 0x4, offset = 0x4, fixed_abs, tag = 'smem constant byte address 0x4 - core index']
  #allocation1 [shape = 'u32[144,128]{1,0:T(1,128)}', space=vmem, size = 0x12000, scoped, tag = 'internal scratch']
  %s0 = inlined_call_operand.vmem [shape: f32[4,128], index: 0, kind: input, shape index: {}]
  %s1 = inlined_call_operand.vmem [shape: f32[96,40], index: 1, kind: input, shape index: {}]
  %s2 = inlined_call_operand.vmem [shape: f32[1,128], index: 2, kind: output, shape index: {}]
  %s3 = sld [smem:[#allocation0]]
  $region18: #{ddsct_block.1} parent=0
    _
  %s5 = ssub.s32 1, %s3
  %s6 = scalar_select 0, %s5, %s3
  // Predicated region
  $region2: #{ddsct_block.1} parent=0 // pred_check
    _
  $region3: #{ddsct_block.1} parent=0 // pred_check_branch
    %8 = sbr.rel (0) target = $region5
  $region4: #{ddsct_block.1} parent=0 // pred_region
    _
  $region5: #{ddsct_block.1} parent=0 // pred_fallthru
    _
  // Predicated region
  $region6: #{ddsct_block.1} parent=0 // pred_check
    _
  $region7: #{ddsct_block.1} parent=0 // pred_check_branch
    %10 = sbr.rel (0) target = $region9
  $region8: #{ddsct_block.1} parent=0 // pred_region
    _
  $region9: #{ddsct_block.1} parent=0 // pred_fallthru
    _
  %v11 = vld [vmem:[%s0] sm:$0xf]
  %v12 = vld [vmem:[%s1] sm:$0xff]
  %v13 = vld [vmem:[%s1 + $0x8] sm:$0xff]
  %v14 = vld [vmem:[%s1 + $0x10] sm:$0xff]
  %vm15 = vcmask 31744
  %v17 = vsel %vm15, %v12, 0
  %v20 = vsel %vm15, %v13, 0
  %v23 = vsel %vm15, %v14, 0
  %vm25 = vcmask 1043456
  %v27 = vsel %vm25, %v11, 0
  %29 = vmatprep.subr.mxu0 0.0
  %30 = vmatpush1.msra.mxu0 %v27
  %31 = vmatprep.subr.mxu0 0.0
  %32 = vmatpush1.msra.mxu0 0.0
  %33 = vmatprep.subr.mxu0 0.0
  %34 = vmatpush1.msra.mxu0 0.0
  %35 = vmatprep.subr.mxu0 0.0
  %36 = vmatpush1.msra.mxu0 0.0
  %37 = vmatprep.subr.mxu0 0.0
  %38 = vmatpush1.msra.mxu0 0.0
  %39 = vmatprep.subr.mxu0 0.0
  %40 = vmatpush1.msra.mxu0 0.0
  %41 = vmatprep.subr.mxu0 0.0
  %42 = vmatpush1.msra.mxu0 0.0
  %43 = vmatprep.subr.mxu0 0.0
  %44 = vmatpush1.msra.mxu0 0.0
  %45 = vmatprep.subr.mxu0 0.0
  %46 = vmatpush1.msra.mxu0 0.0
  %47 = vmatprep.subr.mxu0 0.0
  %48 = vmatpush1.msra.mxu0 0.0
  %49 = vmatprep.subr.mxu0 0.0
  %50 = vmatpush1.msra.mxu0 0.0
  %51 = vmatprep.subr.mxu0 0.0
  %52 = vmatpush1.msra.mxu0 0.0
  %53 = vmatprep.subr.mxu0 0.0
  %54 = vmatpush1.msra.mxu0 0.0
  %55 = vmatprep.subr.mxu0 0.0
  %56 = vmatpush1.msra.mxu0 0.0
  %57 = vmatprep.subr.mxu0 0.0
  %58 = vmatpush1.msra.mxu0 0.0
  %59 = vmatprep.subr.mxu0 0.0
  %60 = vmatpush1.msra.mxu0 0.0
  %61 = vmatprep.subr.mxu0 0.0
  %62 = vmatpush1.msra.mxu0 0.0
  %63 = vmatprep.subr.mxu0 0.0
  %64 = vmatpush1.msra.mxu0 0.0
  %65 = vmatprep.subr.mxu0 0.0
  %66 = vmatpush1.msra.mxu0 0.0
  %67 = vmatprep.subr.mxu0 0.0
  %68 = vmatpush1.msra.mxu0 0.0
  %69 = vmatprep.subr.mxu0 0.0
  %70 = vmatpush1.msra.mxu0 0.0
  %71 = vmatprep.subr.mxu0 0.0
  %72 = vmatpush1.msra.mxu0 0.0
  %73 = vmatprep.subr.mxu0 0.0
  %74 = vmatpush1.msra.mxu0 0.0
  %75 = vmatprep.subr.mxu0 0.0
  %76 = vmatpush1.msra.mxu0 0.0
  %77 = vmatprep.subr.mxu0 0.0
  %78 = vmatpush1.msra.mxu0 0.0
  %79 = vmatprep.subr.mxu0 0.0
  %80 = vmatpush1.msra.mxu0 0.0
  %81 = vmatprep.subr.mxu0 0.0
  %82 = vmatpush1.msra.mxu0 0.0
  %83 = vmatprep.subr.mxu0 0.0
  %84 = vmatpush1.msra.mxu0 0.0
  %85 = vmatprep.subr.mxu0 0.0
  %86 = vmatpush1.msra.mxu0 0.0
  %87 = vmatprep.subr.mxu0 0.0
  %88 = vmatpush1.msra.mxu0 0.0
  %89 = vmatprep.subr.mxu0 0.0
  %90 = vmatpush1.msra.mxu0 0.0
  %91 = vmatprep.subr.mxu0 0.0
  %92 = vmatpush1.msra.mxu0 0.0
  %93 = vmatprep.mubr.f32.mxu0 0.0
  %94 = vmatmul.mubr.f32.gmra.mrb[0].mxu0 %v17
  %v95 = vpop.f32.mrb[0].mxu0
  %v96 = vadd.f32 0.0, %v95
  %v97 = vpop.f32.mrb[0].mxu0
  %98 = vmatprep.mubr.f32.mxu0 0.0
  %99 = vmatmul.mubr.f32.gmra.mrb[0].mxu0 %v20
  %v100 = vpop.f32.mrb[0].mxu0
  %v101 = vadd.f32 0.0, %v100
  %v102 = vpop.f32.mrb[0].mxu0
  %103 = vmatprep.mubr.f32.mxu0 0.0
  %104 = vmatmul.mubr.f32.gmra.mrb[0].mxu0 %v23
  %v105 = vpop.f32.mrb[0].mxu0
  %v106 = vadd.f32 0.0, %v105
  %v107 = vpop.f32.mrb[0].mxu0
  %108 = vdwg.mxu0
  %v109 = vld [vmem:[%s1 + $0x18] sm:$0xff]
  %v110 = vld [vmem:[%s1 + $0x20] sm:$0xff]
  %v111 = vld [vmem:[%s1 + $0x28] sm:$0xff]
  %113 = vset.pattern.permute.xlu0 7
  %114 = vperm.xlu0 %113, %v109
  %v115 = vpop.permute.xlu0 %114
  %118 = vset.pattern.permute.xlu0 7
  %119 = vperm.xlu0 %118, %v110
  %v120 = vpop.permute.xlu0 %119
  %123 = vset.pattern.permute.xlu0 7
  %124 = vperm.xlu0 %123, %v111
  %v125 = vpop.permute.xlu0 %124
  %v127 = vmul.f32 %v115, %v96
  %v128 = vmul.f32 %v120, %v101
  %v129 = vmul.f32 %v125, %v106
  %130 = vrot.lane.b32.xlu0 %v96, 7
  %v131 = vpop.permute.xlu0 %130
  %132 = vrot.lane.b32.xlu0 %v101, 7
  %v133 = vpop.permute.xlu0 %132
  %134 = vrot.lane.b32.xlu0 %v106, 7
  %v135 = vpop.permute.xlu0 %134
  %136 = vset.pattern.permute.xlu0 0
  %137 = vperm.xlu0 %136, %v109
  %v138 = vpop.permute.xlu0 %137
  %140 = vset.pattern.permute.xlu0 0
  %141 = vperm.xlu0 %140, %v110
  %v142 = vpop.permute.xlu0 %141
  %144 = vset.pattern.permute.xlu0 0
  %145 = vperm.xlu0 %144, %v111
  %v146 = vpop.permute.xlu0 %145
  %v148 = vmul.f32 %v138, %v131
  %v149 = vmul.f32 %v142, %v133
  %v150 = vmul.f32 %v146, %v135
  %v151 = vadd.f32 %v127, %v148
  %v152 = vadd.f32 %v128, %v149
  %v153 = vadd.f32 %v129, %v150
  %154 = vrot.lane.b32.xlu0 %v96, 6
  %v155 = vpop.permute.xlu0 %154
  %156 = vrot.lane.b32.xlu0 %v101, 6
  %v157 = vpop.permute.xlu0 %156
  %158 = vrot.lane.b32.xlu0 %v106, 6
  %v159 = vpop.permute.xlu0 %158
  %160 = vset.pattern.permute.xlu0 1
  %161 = vperm.xlu0 %160, %v109
  %v162 = vpop.permute.xlu0 %161
  %164 = vset.pattern.permute.xlu0 1
  %165 = vperm.xlu0 %164, %v110
  %v166 = vpop.permute.xlu0 %165
  %168 = vset.pattern.permute.xlu0 1
  %169 = vperm.xlu0 %168, %v111
  %v170 = vpop.permute.xlu0 %169
  %v172 = vmul.f32 %v162, %v155
  %v173 = vmul.f32 %v166, %v157
  %v174 = vmul.f32 %v170, %v159
  %v175 = vadd.f32 %v151, %v172
  %v176 = vadd.f32 %v152, %v173
  %v177 = vadd.f32 %v153, %v174
  %178 = vrot.lane.b32.xlu0 %v96, 5
  %v179 = vpop.permute.xlu0 %178
  %180 = vrot.lane.b32.xlu0 %v101, 5
  %v181 = vpop.permute.xlu0 %180
  %182 = vrot.lane.b32.xlu0 %v106, 5
  %v183 = vpop.permute.xlu0 %182
  %184 = vset.pattern.permute.xlu0 2
  %185 = vperm.xlu0 %184, %v109
  %v186 = vpop.permute.xlu0 %185
  %188 = vset.pattern.permute.xlu0 2
  %189 = vperm.xlu0 %188, %v110
  %v190 = vpop.permute.xlu0 %189
  %192 = vset.pattern.permute.xlu0 2
  %193 = vperm.xlu0 %192, %v111
  %v194 = vpop.permute.xlu0 %193
  %v196 = vmul.f32 %v186, %v179
  %v197 = vmul.f32 %v190, %v181
  %v198 = vmul.f32 %v194, %v183
  %v199 = vadd.f32 %v175, %v196
  %v200 = vadd.f32 %v176, %v197
  %v201 = vadd.f32 %v177, %v198
  %202 = vrot.lane.b32.xlu0 %v96, 4
  %v203 = vpop.permute.xlu0 %202
  %204 = vrot.lane.b32.xlu0 %v101, 4
  %v205 = vpop.permute.xlu0 %204
  %206 = vrot.lane.b32.xlu0 %v106, 4
  %v207 = vpop.permute.xlu0 %206
  %208 = vset.pattern.permute.xlu0 3
  %209 = vperm.xlu0 %208, %v109
  %v210 = vpop.permute.xlu0 %209
  %212 = vset.pattern.permute.xlu0 3
  %213 = vperm.xlu0 %212, %v110
  %v214 = vpop.permute.xlu0 %213
  %216 = vset.pattern.permute.xlu0 3
  %217 = vperm.xlu0 %216, %v111
  %v218 = vpop.permute.xlu0 %217
  %v220 = vmul.f32 %v210, %v203
  %v221 = vmul.f32 %v214, %v205
  %v222 = vmul.f32 %v218, %v207
  %v223 = vadd.f32 %v199, %v220
  %v224 = vadd.f32 %v200, %v221
  %v225 = vadd.f32 %v201, %v222
  %226 = vrot.lane.b32.xlu0 %v96, 3
  %v227 = vpop.permute.xlu0 %226
  %228 = vrot.lane.b32.xlu0 %v101, 3
  %v229 = vpop.permute.xlu0 %228
  %230 = vrot.lane.b32.xlu0 %v106, 3
  %v231 = vpop.permute.xlu0 %230
  %232 = vset.pattern.permute.xlu0 4
  %233 = vperm.xlu0 %232, %v109
  %v234 = vpop.permute.xlu0 %233
  %236 = vset.pattern.permute.xlu0 4
  %237 = vperm.xlu0 %236, %v110
  %v238 = vpop.permute.xlu0 %237
  %240 = vset.pattern.permute.xlu0 4
  %241 = vperm.xlu0 %240, %v111
  %v242 = vpop.permute.xlu0 %241
  %v244 = vmul.f32 %v234, %v227
  %v245 = vmul.f32 %v238, %v229
  %v246 = vmul.f32 %v242, %v231
  %v247 = vadd.f32 %v223, %v244
  %v248 = vadd.f32 %v224, %v245
  %v249 = vadd.f32 %v225, %v246
  %250 = vrot.lane.b32.xlu0 %v96, 2
  %v251 = vpop.permute.xlu0 %250
  %252 = vrot.lane.b32.xlu0 %v101, 2
  %v253 = vpop.permute.xlu0 %252
  %254 = vrot.lane.b32.xlu0 %v106, 2
  %v255 = vpop.permute.xlu0 %254
  %256 = vset.pattern.permute.xlu0 5
  %257 = vperm.xlu0 %256, %v109
  %v258 = vpop.permute.xlu0 %257
  %260 = vset.pattern.permute.xlu0 5
  %261 = vperm.xlu0 %260, %v110
  %v262 = vpop.permute.xlu0 %261
  %264 = vset.pattern.permute.xlu0 5
  %265 = vperm.xlu0 %264, %v111
  %v266 = vpop.permute.xlu0 %265
  %v268 = vmul.f32 %v258, %v251
  %v269 = vmul.f32 %v262, %v253
  %v270 = vmul.f32 %v266, %v255
  %v271 = vadd.f32 %v247, %v268
  %v272 = vadd.f32 %v248, %v269
  %v273 = vadd.f32 %v249, %v270
  %274 = vrot.lane.b32.xlu0 %v96, 1
  %v275 = vpop.permute.xlu0 %274
  %276 = vrot.lane.b32.xlu0 %v101, 1
  %v277 = vpop.permute.xlu0 %276
  %278 = vrot.lane.b32.xlu0 %v106, 1
  %v279 = vpop.permute.xlu0 %278
  %280 = vset.pattern.permute.xlu0 6
  %281 = vperm.xlu0 %280, %v109
  %v282 = vpop.permute.xlu0 %281
  %284 = vset.pattern.permute.xlu0 6
  %285 = vperm.xlu0 %284, %v110
  %v286 = vpop.permute.xlu0 %285
  %288 = vset.pattern.permute.xlu0 6
  %289 = vperm.xlu0 %288, %v111
  %v290 = vpop.permute.xlu0 %289
  %v292 = vmul.f32 %v282, %v275
  %v293 = vmul.f32 %v286, %v277
  %v294 = vmul.f32 %v290, %v279
  %v295 = vadd.f32 %v271, %v292
  %v296 = vadd.f32 %v272, %v293
  %v297 = vadd.f32 %v273, %v294
  %298 = vrot.lane.b32.xlu0 %v96, 127
  %v299 = vpop.permute.xlu0 %298
  %300 = vrot.lane.b32.xlu0 %v101, 127
  %v301 = vpop.permute.xlu0 %300
  %302 = vrot.lane.b32.xlu0 %v106, 127
  %v303 = vpop.permute.xlu0 %302
  %304 = vset.pattern.permute.xlu0 8
  %305 = vperm.xlu0 %304, %v109
  %v306 = vpop.permute.xlu0 %305
  %308 = vset.pattern.permute.xlu0 8
  %309 = vperm.xlu0 %308, %v110
  %v310 = vpop.permute.xlu0 %309
  %312 = vset.pattern.permute.xlu0 8
  %313 = vperm.xlu0 %312, %v111
  %v314 = vpop.permute.xlu0 %313
  %v316 = vmul.f32 %v306, %v299
  %v317 = vmul.f32 %v310, %v301
  %v318 = vmul.f32 %v314, %v303
  %v319 = vadd.f32 %v295, %v316
  %v320 = vadd.f32 %v296, %v317
  %v321 = vadd.f32 %v297, %v318
  %322 = vrot.lane.b32.xlu0 %v96, 126
  %v323 = vpop.permute.xlu0 %322
  %324 = vrot.lane.b32.xlu0 %v101, 126
  %v325 = vpop.permute.xlu0 %324
  %326 = vrot.lane.b32.xlu0 %v106, 126
  %v327 = vpop.permute.xlu0 %326
  %328 = vset.pattern.permute.xlu0 9
  %329 = vperm.xlu0 %328, %v109
  %v330 = vpop.permute.xlu0 %329
  %332 = vset.pattern.permute.xlu0 9
  %333 = vperm.xlu0 %332, %v110
  %v334 = vpop.permute.xlu0 %333
  %336 = vset.pattern.permute.xlu0 9
  %337 = vperm.xlu0 %336, %v111
  %v338 = vpop.permute.xlu0 %337
  %v340 = vmul.f32 %v330, %v323
  %v341 = vmul.f32 %v334, %v325
  %v342 = vmul.f32 %v338, %v327
  %v343 = vadd.f32 %v319, %v340
  %v344 = vadd.f32 %v320, %v341
  %v345 = vadd.f32 %v321, %v342
  %346 = vrot.lane.b32.xlu0 %v96, 125
  %v347 = vpop.permute.xlu0 %346
  %348 = vrot.lane.b32.xlu0 %v101, 125
  %v349 = vpop.permute.xlu0 %348
  %350 = vrot.lane.b32.xlu0 %v106, 125
  %v351 = vpop.permute.xlu0 %350
  %352 = vset.pattern.permute.xlu0 10
  %353 = vperm.xlu0 %352, %v109
  %v354 = vpop.permute.xlu0 %353
  %356 = vset.pattern.permute.xlu0 10
  %357 = vperm.xlu0 %356, %v110
  %v358 = vpop.permute.xlu0 %357
  %360 = vset.pattern.permute.xlu0 10
  %361 = vperm.xlu0 %360, %v111
  %v362 = vpop.permute.xlu0 %361
  %v364 = vmul.f32 %v354, %v347
  %v365 = vmul.f32 %v358, %v349
  %v366 = vmul.f32 %v362, %v351
  %v367 = vadd.f32 %v343, %v364
  %v368 = vadd.f32 %v344, %v365
  %v369 = vadd.f32 %v345, %v366
  %370 = vrot.lane.b32.xlu0 %v96, 124
  %v371 = vpop.permute.xlu0 %370
  %372 = vrot.lane.b32.xlu0 %v101, 124
  %v373 = vpop.permute.xlu0 %372
  %374 = vrot.lane.b32.xlu0 %v106, 124
  %v375 = vpop.permute.xlu0 %374
  %376 = vset.pattern.permute.xlu0 11
  %377 = vperm.xlu0 %376, %v109
  %v378 = vpop.permute.xlu0 %377
  %380 = vset.pattern.permute.xlu0 11
  %381 = vperm.xlu0 %380, %v110
  %v382 = vpop.permute.xlu0 %381
  %384 = vset.pattern.permute.xlu0 11
  %385 = vperm.xlu0 %384, %v111
  %v386 = vpop.permute.xlu0 %385
  %v388 = vmul.f32 %v378, %v371
  %v389 = vmul.f32 %v382, %v373
  %v390 = vmul.f32 %v386, %v375
  %v391 = vadd.f32 %v367, %v388
  %v392 = vadd.f32 %v368, %v389
  %v393 = vadd.f32 %v369, %v390
  %394 = vrot.lane.b32.xlu0 %v96, 123
  %v395 = vpop.permute.xlu0 %394
  %396 = vrot.lane.b32.xlu0 %v101, 123
  %v397 = vpop.permute.xlu0 %396
  %398 = vrot.lane.b32.xlu0 %v106, 123
  %v399 = vpop.permute.xlu0 %398
  %400 = vset.pattern.permute.xlu0 12
  %401 = vperm.xlu0 %400, %v109
  %v402 = vpop.permute.xlu0 %401
  %404 = vset.pattern.permute.xlu0 12
  %405 = vperm.xlu0 %404, %v110
  %v406 = vpop.permute.xlu0 %405
  %408 = vset.pattern.permute.xlu0 12
  %409 = vperm.xlu0 %408, %v111
  %v410 = vpop.permute.xlu0 %409
  %v412 = vmul.f32 %v402, %v395
  %v413 = vmul.f32 %v406, %v397
  %v414 = vmul.f32 %v410, %v399
  %v415 = vadd.f32 %v391, %v412
  %v416 = vadd.f32 %v392, %v413
  %v417 = vadd.f32 %v393, %v414
  %418 = vrot.lane.b32.xlu0 %v96, 122
  %v419 = vpop.permute.xlu0 %418
  %420 = vrot.lane.b32.xlu0 %v101, 122
  %v421 = vpop.permute.xlu0 %420
  %422 = vrot.lane.b32.xlu0 %v106, 122
  %v423 = vpop.permute.xlu0 %422
  %424 = vset.pattern.permute.xlu0 13
  %425 = vperm.xlu0 %424, %v109
  %v426 = vpop.permute.xlu0 %425
  %428 = vset.pattern.permute.xlu0 13
  %429 = vperm.xlu0 %428, %v110
  %v430 = vpop.permute.xlu0 %429
  %432 = vset.pattern.permute.xlu0 13
  %433 = vperm.xlu0 %432, %v111
  %v434 = vpop.permute.xlu0 %433
  %v436 = vmul.f32 %v426, %v419
  %v437 = vmul.f32 %v430, %v421
  %v438 = vmul.f32 %v434, %v423
  %v439 = vadd.f32 %v415, %v436
  %v440 = vadd.f32 %v416, %v437
  %v441 = vadd.f32 %v417, %v438
  %442 = vrot.lane.b32.xlu0 %v96, 121
  %v443 = vpop.permute.xlu0 %442
  %444 = vrot.lane.b32.xlu0 %v101, 121
  %v445 = vpop.permute.xlu0 %444
  %446 = vrot.lane.b32.xlu0 %v106, 121
  %v447 = vpop.permute.xlu0 %446
  %448 = vset.pattern.permute.xlu0 14
  %449 = vperm.xlu0 %448, %v109
  %v450 = vpop.permute.xlu0 %449
  %452 = vset.pattern.permute.xlu0 14
  %453 = vperm.xlu0 %452, %v110
  %v454 = vpop.permute.xlu0 %453
  %456 = vset.pattern.permute.xlu0 14
  %457 = vperm.xlu0 %456, %v111
  %v458 = vpop.permute.xlu0 %457
  %v460 = vmul.f32 %v450, %v443
  %v461 = vmul.f32 %v454, %v445
  %v462 = vmul.f32 %v458, %v447
  %v463 = vadd.f32 %v439, %v460
  %v464 = vadd.f32 %v440, %v461
  %v465 = vadd.f32 %v441, %v462
  %v467 = vrot.slane %v463, 4
  %468 = vrot.lane.b32.xlu0 %v463, 64
  %v469 = vpop.permute.xlu0 %468
  %470 = vrot.lane.b32.xlu0 %v467, 64
  %v471 = vpop.permute.xlu0 %470
  %v473 = vrot.slane %v464, 4
  %475 = vrot.lane.b32.xlu0 %v464, 64
  %v476 = vpop.permute.xlu0 %475
  %478 = vrot.lane.b32.xlu0 %v473, 64
  %v479 = vpop.permute.xlu0 %478
  %v482 = vrot.slane %v465, 4
  %483 = vrot.lane.b32.xlu0 %v465, 64
  %v484 = vpop.permute.xlu0 %483
  %485 = vrot.lane.b32.xlu0 %v482, 64
  %v486 = vpop.permute.xlu0 %485
  %487 = vxpose.xlu0.b32.start [1/16] %v464, 128
  %488 = vxpose.xlu0.b32.cont [2/16] 0.0, 128
  %489 = vxpose.xlu0.b32.cont [3/16] 0.0, 128
  %490 = vxpose.xlu0.b32.cont [4/16] 0.0, 128
  %491 = vxpose.xlu0.b32.cont [5/16] 0.0, 128
  %492 = vxpose.xlu0.b32.cont [6/16] 0.0, 128
  %493 = vxpose.xlu0.b32.cont [7/16] 0.0, 128
  %494 = vxpose.xlu0.b32.cont [8/16] 0.0, 128
  %495 = vxpose.xlu0.b32.cont [9/16] 0.0, 128
  %496 = vxpose.xlu0.b32.cont [10/16] 0.0, 128
  %497 = vxpose.xlu0.b32.cont [11/16] 0.0, 128
  %498 = vxpose.xlu0.b32.cont [12/16] 0.0, 128
  %499 = vxpose.xlu0.b32.cont [13/16] 0.0, 128
  %500 = vxpose.xlu0.b32.cont [14/16] 0.0, 128
  %501 = vxpose.xlu0.b32.cont [15/16] 0.0, 128
  %502 = vxpose.xlu0.b32.end [16/16] 0.0, 128
  %v503 = vpop.trf.xlu0
  %v504 = vpop.trf.xlu0
  %v505 = vpop.trf.xlu0
  %v506 = vpop.trf.xlu0
  %v507 = vpop.trf.xlu0
  %v508 = vpop.trf.xlu0
  %v509 = vpop.trf.xlu0
  %v510 = vpop.trf.xlu0
  %v511 = vpop.trf.xlu0
  %v512 = vpop.trf.xlu0
  %v513 = vpop.trf.xlu0
  %v514 = vpop.trf.xlu0
  %v515 = vpop.trf.xlu0
  %v516 = vpop.trf.xlu0
  %v517 = vpop.trf.xlu0
  %v518 = vpop.trf.xlu0
  %v520 = vsel %vm15, %v503, 0
  %v523 = vsel %vm15, %v504, 0
  %v525 = vsel %vm25, %v463, 0
  %527 = vmatprep.subr.mxu0 0.0
  %528 = vmatpush1.msra.mxu0 %v525
  %529 = vmatprep.subr.mxu0 0.0
  %530 = vmatpush1.msra.mxu0 0.0
  %531 = vmatprep.subr.mxu0 0.0
  %532 = vmatpush1.msra.mxu0 0.0
  %533 = vmatprep.subr.mxu0 0.0
  %534 = vmatpush1.msra.mxu0 0.0
  %535 = vmatprep.subr.mxu0 0.0
  %536 = vmatpush1.msra.mxu0 0.0
  %537 = vmatprep.subr.mxu0 0.0
  %538 = vmatpush1.msra.mxu0 0.0
  %539 = vmatprep.subr.mxu0 0.0
  %540 = vmatpush1.msra.mxu0 0.0
  %541 = vmatprep.subr.mxu0 0.0
  %542 = vmatpush1.msra.mxu0 0.0
  %543 = vmatprep.subr.mxu0 0.0
  %544 = vmatpush1.msra.mxu0 0.0
  %545 = vmatprep.subr.mxu0 0.0
  %546 = vmatpush1.msra.mxu0 0.0
  %547 = vmatprep.subr.mxu0 0.0
  %548 = vmatpush1.msra.mxu0 0.0
  %549 = vmatprep.subr.mxu0 0.0
  %550 = vmatpush1.msra.mxu0 0.0
  %551 = vmatprep.subr.mxu0 0.0
  %552 = vmatpush1.msra.mxu0 0.0
  %553 = vmatprep.subr.mxu0 0.0
  %554 = vmatpush1.msra.mxu0 0.0
  %555 = vmatprep.subr.mxu0 0.0
  %556 = vmatpush1.msra.mxu0 0.0
  %557 = vmatprep.subr.mxu0 0.0
  %558 = vmatpush1.msra.mxu0 0.0
  %559 = vmatprep.subr.mxu0 0.0
  %560 = vmatpush1.msra.mxu0 0.0
  %561 = vmatprep.subr.mxu0 0.0
  %562 = vmatpush1.msra.mxu0 0.0
  %563 = vmatprep.subr.mxu0 0.0
  %564 = vmatpush1.msra.mxu0 0.0
  %565 = vmatprep.subr.mxu0 0.0
  %566 = vmatpush1.msra.mxu0 0.0
  %567 = vmatprep.subr.mxu0 0.0
  %568 = vmatpush1.msra.mxu0 0.0
  %569 = vmatprep.subr.mxu0 0.0
  %570 = vmatpush1.msra.mxu0 0.0
  %571 = vmatprep.subr.mxu0 0.0
  %572 = vmatpush1.msra.mxu0 0.0
  %573 = vmatprep.subr.mxu0 0.0
  %574 = vmatpush1.msra.mxu0 0.0
  %575 = vmatprep.subr.mxu0 0.0
  %576 = vmatpush1.msra.mxu0 0.0
  %577 = vmatprep.subr.mxu0 0.0
  %578 = vmatpush1.msra.mxu0 0.0
  %579 = vmatprep.subr.mxu0 0.0
  %580 = vmatpush1.msra.mxu0 0.0
  %581 = vmatprep.subr.mxu0 0.0
  %582 = vmatpush1.msra.mxu0 0.0
  %583 = vmatprep.subr.mxu0 0.0
  %584 = vmatpush1.msra.mxu0 0.0
  %585 = vmatprep.subr.mxu0 0.0
  %586 = vmatpush1.msra.mxu0 0.0
  %587 = vmatprep.subr.mxu0 0.0
  %588 = vmatpush1.msra.mxu0 0.0
  %589 = vmatprep.subr.mxu0 0.0
  %590 = vmatpush1.msra.mxu0 0.0
  %591 = vmatprep.mubr.f32.mxu0 0.0
  %592 = vmatmul.mubr.f32.gmra.mrb[0].mxu0 %v520
  %v593 = vpop.f32.mrb[0].mxu0
  %v594 = vadd.f32 0.0, %v593
  %v595 = vpop.f32.mrb[0].mxu0
  %596 = vmatprep.mubr.f32.mxu0 0.0
  %597 = vmatmul.mubr.f32.gmra.mrb[0].mxu0 %v523
  %v598 = vpop.f32.mrb[0].mxu0
  %v599 = vadd.f32 0.0, %v598
  %v600 = vpop.f32.mrb[0].mxu0
  %601 = vdwg.mxu0
  %602 = vxpose.xlu0.b32.start [1/16] %v473, 128
  %603 = vxpose.xlu0.b32.cont [2/16] 0.0, 128
  %604 = vxpose.xlu0.b32.cont [3/16] 0.0, 128
  %605 = vxpose.xlu0.b32.cont [4/16] 0.0, 128
  %606 = vxpose.xlu0.b32.cont [5/16] 0.0, 128
  %607 = vxpose.xlu0.b32.cont [6/16] 0.0, 128
  %608 = vxpose.xlu0.b32.cont [7/16] 0.0, 128
  %609 = vxpose.xlu0.b32.cont [8/16] 0.0, 128
  %610 = vxpose.xlu0.b32.cont [9/16] 0.0, 128
  %611 = vxpose.xlu0.b32.cont [10/16] 0.0, 128
  %612 = vxpose.xlu0.b32.cont [11/16] 0.0, 128
  %613 = vxpose.xlu0.b32.cont [12/16] 0.0, 128
  %614 = vxpose.xlu0.b32.cont [13/16] 0.0, 128
  %615 = vxpose.xlu0.b32.cont [14/16] 0.0, 128
  %616 = vxpose.xlu0.b32.cont [15/16] 0.0, 128
  %617 = vxpose.xlu0.b32.end [16/16] 0.0, 128
  %v618 = vpop.trf.xlu0
  %v619 = vpop.trf.xlu0
  %v620 = vpop.trf.xlu0
  %v621 = vpop.trf.xlu0
  %v622 = vpop.trf.xlu0
  %v623 = vpop.trf.xlu0
  %v624 = vpop.trf.xlu0
  %v625 = vpop.trf.xlu0
  %v626 = vpop.trf.xlu0
  %v627 = vpop.trf.xlu0
  %v628 = vpop.trf.xlu0
  %v629 = vpop.trf.xlu0
  %v630 = vpop.trf.xlu0
  %v631 = vpop.trf.xlu0
  %v632 = vpop.trf.xlu0
  %v633 = vpop.trf.xlu0
  %v635 = vsel %vm15, %v618, 0
  %v638 = vsel %vm15, %v619, 0
  %v640 = vsel %vm25, %v467, 0
  %642 = vmatprep.subr.mxu0 0.0
  %643 = vmatpush1.msra.mxu0 %v640
  %644 = vmatprep.subr.mxu0 0.0
  %645 = vmatpush1.msra.mxu0 0.0
  %646 = vmatprep.subr.mxu0 0.0
  %647 = vmatpush1.msra.mxu0 0.0
  %648 = vmatprep.subr.mxu0 0.0
  %649 = vmatpush1.msra.mxu0 0.0
  %650 = vmatprep.subr.mxu0 0.0
  %651 = vmatpush1.msra.mxu0 0.0
  %652 = vmatprep.subr.mxu0 0.0
  %653 = vmatpush1.msra.mxu0 0.0
  %654 = vmatprep.subr.mxu0 0.0
  %655 = vmatpush1.msra.mxu0 0.0
  %656 = vmatprep.subr.mxu0 0.0
  %657 = vmatpush1.msra.mxu0 0.0
  %658 = vmatprep.subr.mxu0 0.0
  %659 = vmatpush1.msra.mxu0 0.0
  %660 = vmatprep.subr.mxu0 0.0
  %661 = vmatpush1.msra.mxu0 0.0
  %662 = vmatprep.subr.mxu0 0.0
  %663 = vmatpush1.msra.mxu0 0.0
  %664 = vmatprep.subr.mxu0 0.0
  %665 = vmatpush1.msra.mxu0 0.0
  %666 = vmatprep.subr.mxu0 0.0
  %667 = vmatpush1.msra.mxu0 0.0
  %668 = vmatprep.subr.mxu0 0.0
  %669 = vmatpush1.msra.mxu0 0.0
  %670 = vmatprep.subr.mxu0 0.0
  %671 = vmatpush1.msra.mxu0 0.0
  %672 = vmatprep.subr.mxu0 0.0
  %673 = vmatpush1.msra.mxu0 0.0
  %674 = vmatprep.subr.mxu0 0.0
  %675 = vmatpush1.msra.mxu0 0.0
  %676 = vmatprep.subr.mxu0 0.0
  %677 = vmatpush1.msra.mxu0 0.0
  %678 = vmatprep.subr.mxu0 0.0
  %679 = vmatpush1.msra.mxu0 0.0
  %680 = vmatprep.subr.mxu0 0.0
  %681 = vmatpush1.msra.mxu0 0.0
  %682 = vmatprep.subr.mxu0 0.0
  %683 = vmatpush1.msra.mxu0 0.0
  %684 = vmatprep.subr.mxu0 0.0
  %685 = vmatpush1.msra.mxu0 0.0
  %686 = vmatprep.subr.mxu0 0.0
  %687 = vmatpush1.msra.mxu0 0.0
  %688 = vmatprep.subr.mxu0 0.0
  %689 = vmatpush1.msra.mxu0 0.0
  %690 = vmatprep.subr.mxu0 0.0
  %691 = vmatpush1.msra.mxu0 0.0
  %692 = vmatprep.subr.mxu0 0.0
  %693 = vmatpush1.msra.mxu0 0.0
  %694 = vmatprep.subr.mxu0 0.0
  %695 = vmatpush1.msra.mxu0 0.0
  %696 = vmatprep.subr.mxu0 0.0
  %697 = vmatpush1.msra.mxu0 0.0
  %698 = vmatprep.subr.mxu0 0.0
  %699 = vmatpush1.msra.mxu0 0.0
  %700 = vmatprep.subr.mxu0 0.0
  %701 = vmatpush1.msra.mxu0 0.0
  %702 = vmatprep.subr.mxu0 0.0
  %703 = vmatpush1.msra.mxu0 0.0
  %704 = vmatprep.subr.mxu0 0.0
  %705 = vmatpush1.msra.mxu0 0.0
  %706 = vmatprep.mubr.f32.mxu0 0.0
  %707 = vmatmul.mubr.f32.gmra.mrb[0].mxu0 %v635
  %v708 = vpop.f32.mrb[0].mxu0
  %v709 = vadd.f32 0.0, %v708
  %v710 = vpop.f32.mrb[0].mxu0
  %711 = vmatprep.mubr.f32.mxu0 0.0
  %712 = vmatmul.mubr.f32.gmra.mrb[0].mxu0 %v638
  %v713 = vpop.f32.mrb[0].mxu0
  %v714 = vadd.f32 0.0, %v713
  %v715 = vpop.f32.mrb[0].mxu0
  %716 = vdwg.mxu0
  %717 = vxpose.xlu0.b32.start [1/16] %v476, 128
  %718 = vxpose.xlu0.b32.cont [2/16] 0.0, 128
  %719 = vxpose.xlu0.b32.cont [3/16] 0.0, 128
  %720 = vxpose.xlu0.b32.cont [4/16] 0.0, 128
  %721 = vxpose.xlu0.b32.cont [5/16] 0.0, 128
  %722 = vxpose.xlu0.b32.cont [6/16] 0.0, 128
  %723 = vxpose.xlu0.b32.cont [7/16] 0.0, 128
  %724 = vxpose.xlu0.b32.cont [8/16] 0.0, 128
  %725 = vxpose.xlu0.b32.cont [9/16] 0.0, 128
  %726 = vxpose.xlu0.b32.cont [10/16] 0.0, 128
  %727 = vxpose.xlu0.b32.cont [11/16] 0.0, 128
  %728 = vxpose.xlu0.b32.cont [12/16] 0.0, 128
  %729 = vxpose.xlu0.b32.cont [13/16] 0.0, 128
  %730 = vxpose.xlu0.b32.cont [14/16] 0.0, 128
  %731 = vxpose.xlu0.b32.cont [15/16] 0.0, 128
  %732 = vxpose.xlu0.b32.end [16/16] 0.0, 128
  %v733 = vpop.trf.xlu0
  %v734 = vpop.trf.xlu0
  %v735 = vpop.trf.xlu0
  %v736 = vpop.trf.xlu0
  %v737 = vpop.trf.xlu0
  %v738 = vpop.trf.xlu0
  %v739 = vpop.trf.xlu0
  %v740 = vpop.trf.xlu0
  %v741 = vpop.trf.xlu0
  %v742 = vpop.trf.xlu0
  %v743 = vpop.trf.xlu0
  %v744 = vpop.trf.xlu0
  %v745 = vpop.trf.xlu0
  %v746 = vpop.trf.xlu0
  %v747 = vpop.trf.xlu0
  %v748 = vpop.trf.xlu0
  %v750 = vsel %vm15, %v733, 0
  %v753 = vsel %vm15, %v734, 0
  %v755 = vsel %vm25, %v469, 0
  %757 = vmatprep.subr.mxu0 0.0
  %758 = vmatpush1.msra.mxu0 %v755
  %759 = vmatprep.subr.mxu0 0.0
  %760 = vmatpush1.msra.mxu0 0.0
  %761 = vmatprep.subr.mxu0 0.0
  %762 = vmatpush1.msra.mxu0 0.0
  %763 = vmatprep.subr.mxu0 0.0
  %764 = vmatpush1.msra.mxu0 0.0
  %765 = vmatprep.subr.mxu0 0.0
  %766 = vmatpush1.msra.mxu0 0.0
  %767 = vmatprep.subr.mxu0 0.0
  %768 = vmatpush1.msra.mxu0 0.0
  %769 = vmatprep.subr.mxu0 0.0
  %770 = vmatpush1.msra.mxu0 0.0
  %771 = vmatprep.subr.mxu0 0.0
  %772 = vmatpush1.msra.mxu0 0.0
  %773 = vmatprep.subr.mxu0 0.0
  %774 = vmatpush1.msra.mxu0 0.0
  %775 = vmatprep.subr.mxu0 0.0
  %776 = vmatpush1.msra.mxu0 0.0
  %777 = vmatprep.subr.mxu0 0.0
  %778 = vmatpush1.msra.mxu0 0.0
  %779 = vmatprep.subr.mxu0 0.0
  %780 = vmatpush1.msra.mxu0 0.0
  %781 = vmatprep.subr.mxu0 0.0
  %782 = vmatpush1.msra.mxu0 0.0
  %783 = vmatprep.subr.mxu0 0.0
  %784 = vmatpush1.msra.mxu0 0.0
  %785 = vmatprep.subr.mxu0 0.0
  %786 = vmatpush1.msra.mxu0 0.0
  %787 = vmatprep.subr.mxu0 0.0
  %788 = vmatpush1.msra.mxu0 0.0
  %789 = vmatprep.subr.mxu0 0.0
  %790 = vmatpush1.msra.mxu0 0.0
  %791 = vmatprep.subr.mxu0 0.0
  %792 = vmatpush1.msra.mxu0 0.0
  %793 = vmatprep.subr.mxu0 0.0
  %794 = vmatpush1.msra.mxu0 0.0
  %795 = vmatprep.subr.mxu0 0.0
  %796 = vmatpush1.msra.mxu0 0.0
  %797 = vmatprep.subr.mxu0 0.0
  %798 = vmatpush1.msra.mxu0 0.0
  %799 = vmatprep.subr.mxu0 0.0
  %800 = vmatpush1.msra.mxu0 0.0
  %801 = vmatprep.subr.mxu0 0.0
  %802 = vmatpush1.msra.mxu0 0.0
  %803 = vmatprep.subr.mxu0 0.0
  %804 = vmatpush1.msra.mxu0 0.0
  %805 = vmatprep.subr.mxu0 0.0
  %806 = vmatpush1.msra.mxu0 0.0
  %807 = vmatprep.subr.mxu0 0.0
  %808 = vmatpush1.msra.mxu0 0.0
  %809 = vmatprep.subr.mxu0 0.0
  %810 = vmatpush1.msra.mxu0 0.0
  %811 = vmatprep.subr.mxu0 0.0
  %812 = vmatpush1.msra.mxu0 0.0
  %813 = vmatprep.subr.mxu0 0.0
  %814 = vmatpush1.msra.mxu0 0.0
  %815 = vmatprep.subr.mxu0 0.0
  %816 = vmatpush1.msra.mxu0 0.0
  %817 = vmatprep.subr.mxu0 0.0
  %818 = vmatpush1.msra.mxu0 0.0
  %819 = vmatprep.subr.mxu0 0.0
  %820 = vmatpush1.msra.mxu0 0.0
  %821 = vmatprep.mubr.f32.mxu0 0.0
  %822 = vmatmul.mubr.f32.gmra.mrb[0].mxu0 %v750
  %v823 = vpop.f32.mrb[0].mxu0
  %v824 = vadd.f32 0.0, %v823
  %v825 = vpop.f32.mrb[0].mxu0
  %826 = vmatprep.mubr.f32.mxu0 0.0
  %827 = vmatmul.mubr.f32.gmra.mrb[0].mxu0 %v753
  %v828 = vpop.f32.mrb[0].mxu0
  %v829 = vadd.f32 0.0, %v828
  %v830 = vpop.f32.mrb[0].mxu0
  %831 = vdwg.mxu0
  %832 = vxpose.xlu0.b32.start [1/16] %v479, 128
  %833 = vxpose.xlu0.b32.cont [2/16] 0.0, 128
  %834 = vxpose.xlu0.b32.cont [3/16] 0.0, 128
  %835 = vxpose.xlu0.b32.cont [4/16] 0.0, 128
  %836 = vxpose.xlu0.b32.cont [5/16] 0.0, 128
  %837 = vxpose.xlu0.b32.cont [6/16] 0.0, 128
  %838 = vxpose.xlu0.b32.cont [7/16] 0.0, 128
  %839 = vxpose.xlu0.b32.cont [8/16] 0.0, 128
  %840 = vxpose.xlu0.b32.cont [9/16] 0.0, 128
  %841 = vxpose.xlu0.b32.cont [10/16] 0.0, 128
  %842 = vxpose.xlu0.b32.cont [11/16] 0.0, 128
  %843 = vxpose.xlu0.b32.cont [12/16] 0.0, 128
  %844 = vxpose.xlu0.b32.cont [13/16] 0.0, 128
  %845 = vxpose.xlu0.b32.cont [14/16] 0.0, 128
  %846 = vxpose.xlu0.b32.cont [15/16] 0.0, 128
  %847 = vxpose.xlu0.b32.end [16/16] 0.0, 128
  %v848 = vpop.trf.xlu0
  %v849 = vpop.trf.xlu0
  %v850 = vpop.trf.xlu0
  %v851 = vpop.trf.xlu0
  %v852 = vpop.trf.xlu0
  %v853 = vpop.trf.xlu0
  %v854 = vpop.trf.xlu0
  %v855 = vpop.trf.xlu0
  %v856 = vpop.trf.xlu0
  %v857 = vpop.trf.xlu0
  %v858 = vpop.trf.xlu0
  %v859 = vpop.trf.xlu0
  %v860 = vpop.trf.xlu0
  %v861 = vpop.trf.xlu0
  %v862 = vpop.trf.xlu0
  %v863 = vpop.trf.xlu0
  %v865 = vsel %vm15, %v848, 0
  %v868 = vsel %vm15, %v849, 0
  %v870 = vsel %vm25, %v471, 0
  %872 = vmatprep.subr.mxu0 0.0
  %873 = vmatpush1.msra.mxu0 %v870
  %874 = vmatprep.subr.mxu0 0.0
  %875 = vmatpush1.msra.mxu0 0.0
  %876 = vmatprep.subr.mxu0 0.0
  %877 = vmatpush1.msra.mxu0 0.0
  %878 = vmatprep.subr.mxu0 0.0
  %879 = vmatpush1.msra.mxu0 0.0
  %880 = vmatprep.subr.mxu0 0.0
  %881 = vmatpush1.msra.mxu0 0.0
  %882 = vmatprep.subr.mxu0 0.0
  %883 = vmatpush1.msra.mxu0 0.0
  %884 = vmatprep.subr.mxu0 0.0
  %885 = vmatpush1.msra.mxu0 0.0
  %886 = vmatprep.subr.mxu0 0.0
  %887 = vmatpush1.msra.mxu0 0.0
  %888 = vmatprep.subr.mxu0 0.0
  %889 = vmatpush1.msra.mxu0 0.0
  %890 = vmatprep.subr.mxu0 0.0
  %891 = vmatpush1.msra.mxu0 0.0
  %892 = vmatprep.subr.mxu0 0.0
  %893 = vmatpush1.msra.mxu0 0.0
  %894 = vmatprep.subr.mxu0 0.0
  %895 = vmatpush1.msra.mxu0 0.0
  %896 = vmatprep.subr.mxu0 0.0
  %897 = vmatpush1.msra.mxu0 0.0
  %898 = vmatprep.subr.mxu0 0.0
  %899 = vmatpush1.msra.mxu0 0.0
  %900 = vmatprep.subr.mxu0 0.0
  %901 = vmatpush1.msra.mxu0 0.0
  %902 = vmatprep.subr.mxu0 0.0
  %903 = vmatpush1.msra.mxu0 0.0
  %904 = vmatprep.subr.mxu0 0.0
  %905 = vmatpush1.msra.mxu0 0.0
  %906 = vmatprep.subr.mxu0 0.0
  %907 = vmatpush1.msra.mxu0 0.0
  %908 = vmatprep.subr.mxu0 0.0
  %909 = vmatpush1.msra.mxu0 0.0
  %910 = vmatprep.subr.mxu0 0.0
  %911 = vmatpush1.msra.mxu0 0.0
  %912 = vmatprep.subr.mxu0 0.0
  %913 = vmatpush1.msra.mxu0 0.0
  %914 = vmatprep.subr.mxu0 0.0
  %915 = vmatpush1.msra.mxu0 0.0
  %916 = vmatprep.subr.mxu0 0.0
  %917 = vmatpush1.msra.mxu0 0.0
  %918 = vmatprep.subr.mxu0 0.0
  %919 = vmatpush1.msra.mxu0 0.0
  %920 = vmatprep.subr.mxu0 0.0
  %921 = vmatpush1.msra.mxu0 0.0
  %922 = vmatprep.subr.mxu0 0.0
  %923 = vmatpush1.msra.mxu0 0.0
  %924 = vmatprep.subr.mxu0 0.0
  %925 = vmatpush1.msra.mxu0 0.0
  %926 = vmatprep.subr.mxu0 0.0
  %927 = vmatpush1.msra.mxu0 0.0
  %928 = vmatprep.subr.mxu0 0.0
  %929 = vmatpush1.msra.mxu0 0.0
  %930 = vmatprep.subr.mxu0 0.0
  %931 = vmatpush1.msra.mxu0 0.0
  %932 = vmatprep.subr.mxu0 0.0
  %933 = vmatpush1.msra.mxu0 0.0
  %934 = vmatprep.subr.mxu0 0.0
  %935 = vmatpush1.msra.mxu0 0.0
  %936 = vmatprep.mubr.f32.mxu0 0.0
  %937 = vmatmul.mubr.f32.gmra.mrb[0].mxu0 %v865
  %v938 = vpop.f32.mrb[0].mxu0
  %v939 = vadd.f32 0.0, %v938
  %v940 = vpop.f32.mrb[0].mxu0
  %941 = vmatprep.mubr.f32.mxu0 0.0
  %942 = vmatmul.mubr.f32.gmra.mrb[0].mxu0 %v868
  %v943 = vpop.f32.mrb[0].mxu0
  %v944 = vadd.f32 0.0, %v943
  %v945 = vpop.f32.mrb[0].mxu0
  %946 = vdwg.mxu0
  %vm947 = vcmask 130048
  %v948 = vsel %vm947, %v594, -inf
  %v949 = vsel %vm947, %v599, -inf
  %v950 = vmax.f32 %v948, %v949
  %v951 = vrot.slane %v950, 4
  %v952 = vmax.f32 %v950, %v951
  %v953 = vrot.slane %v952, 2
  %v954 = vmax.f32 %v952, %v953
  %v955 = vrot.slane %v954, 1
  %v956 = vmax.f32 %v954, %v955
  %v957 = vsel %vm947, %v709, -inf
  %v958 = vsel %vm947, %v714, -inf
  %v959 = vmax.f32 %v957, %v958
  %v960 = vrot.slane %v959, 4
  %v961 = vmax.f32 %v959, %v960
  %v962 = vrot.slane %v961, 2
  %v963 = vmax.f32 %v961, %v962
  %v964 = vrot.slane %v963, 1
  %v965 = vmax.f32 %v963, %v964
  %v966 = vsel %vm947, %v824, -inf
  %v967 = vsel %vm947, %v829, -inf
  %v968 = vmax.f32 %v966, %v967
  %v969 = vrot.slane %v968, 4
  %v970 = vmax.f32 %v968, %v969
  %v971 = vrot.slane %v970, 2
  %v972 = vmax.f32 %v970, %v971
  %v973 = vrot.slane %v972, 1
  %v974 = vmax.f32 %v972, %v973
  %v975 = vsel %vm947, %v939, -inf
  %v976 = vsel %vm947, %v944, -inf
  %v977 = vmax.f32 %v975, %v976
  %v978 = vrot.slane %v977, 4
  %v979 = vmax.f32 %v977, %v978
  %v980 = vrot.slane %v979, 2
  %v981 = vmax.f32 %v979, %v980
  %v982 = vrot.slane %v981, 1
  %v983 = vmax.f32 %v981, %v982
  %v984 = vsub.f32 %v594, %v956
  %v985 = vsub.f32 %v599, %v956
  %v986 = vsub.f32 %v709, %v965
  %v987 = vsub.f32 %v714, %v965
  %v988 = vsub.f32 %v824, %v974
  %v989 = vsub.f32 %v829, %v974
  %v990 = vsub.f32 %v939, %v983
  %v991 = vsub.f32 %v944, %v983
  %v992 = vmul.f32 %v984, 1.442695
  %v993 = vpow.pop %v992
  %v994 = vmul.f32 %v985, 1.442695
  %v995 = vpow.pop %v994
  %v996 = vmul.f32 %v986, 1.442695
  %v997 = vpow.pop %v996
  %v998 = vmul.f32 %v987, 1.442695
  %v999 = vpow.pop %v998
  %v1000 = vmul.f32 %v988, 1.442695
  %v1001 = vpow.pop %v1000
  %v1002 = vmul.f32 %v989, 1.442695
  %v1003 = vpow.pop %v1002
  %v1004 = vmul.f32 %v990, 1.442695
  %v1005 = vpow.pop %v1004
  %v1006 = vmul.f32 %v991, 1.442695
  %v1007 = vpow.pop %v1006
  %v1008 = vsel %vm947, %v993, 0.0
  %v1009 = vsel %vm947, %v995, 0.0
  %v1010 = vadd.f32 %v1008, %v1009
  %v1011 = vrot.slane %v1010, 4
  %v1012 = vadd.f32 %v1010, %v1011
  %v1013 = vrot.slane %v1012, 2
  %v1014 = vadd.f32 %v1012, %v1013
  %v1015 = vrot.slane %v1014, 1
  %v1016 = vadd.f32 %v1014, %v1015
  %v1017 = vsel %vm947, %v997, 0.0
  %v1018 = vsel %vm947, %v999, 0.0
  %v1019 = vadd.f32 %v1017, %v1018
  %v1020 = vrot.slane %v1019, 4
  %v1021 = vadd.f32 %v1019, %v1020
  %v1022 = vrot.slane %v1021, 2
  %v1023 = vadd.f32 %v1021, %v1022
  %v1024 = vrot.slane %v1023, 1
  %v1025 = vadd.f32 %v1023, %v1024
  %v1026 = vsel %vm947, %v1001, 0.0
  %v1027 = vsel %vm947, %v1003, 0.0
  %v1028 = vadd.f32 %v1026, %v1027
  %v1029 = vrot.slane %v1028, 4
  %v1030 = vadd.f32 %v1028, %v1029
  %v1031 = vrot.slane %v1030, 2
  %v1032 = vadd.f32 %v1030, %v1031
  %v1033 = vrot.slane %v1032, 1
  %v1034 = vadd.f32 %v1032, %v1033
  %v1035 = vsel %vm947, %v1005, 0.0
  %v1036 = vsel %vm947, %v1007, 0.0
  %v1037 = vadd.f32 %v1035, %v1036
  %v1038 = vrot.slane %v1037, 4
  %v1039 = vadd.f32 %v1037, %v1038
  %v1040 = vrot.slane %v1039, 2
  %v1041 = vadd.f32 %v1039, %v1040
  %v1042 = vrot.slane %v1041, 1
  %v1043 = vadd.f32 %v1041, %v1042
  %v1044 = vrcp.pop %v1016
  %v1045 = vrcp.pop %v1025
  %v1046 = vrcp.pop %v1034
  %v1047 = vrcp.pop %v1043
  %v1048 = vmul.f32 %v993, %v1044
  %v1049 = vmul.f32 %v995, %v1044
  %v1050 = vmul.f32 %v997, %v1045
  %v1051 = vmul.f32 %v999, %v1045
  %v1052 = vmul.f32 %v1001, %v1046
  %v1053 = vmul.f32 %v1003, %v1046
  %v1054 = vmul.f32 %v1005, %v1047
  %v1055 = vmul.f32 %v1007, %v1047
  %v1056 = vsel %vm947, %v465, 0
  %1058 = vmatprep.subr.mxu0 0.0
  %1059 = vmatpush1.msra.mxu0 %v1048
  %1060 = vmatprep.subr.mxu0 0.0
  %1061 = vmatpush1.msra.mxu0 %v1049
  %1062 = vmatprep.subr.mxu0 0.0
  %1063 = vmatpush1.msra.mxu0 0.0
  %1064 = vmatprep.subr.mxu0 0.0
  %1065 = vmatpush1.msra.mxu0 0.0
  %1066 = vmatprep.subr.mxu0 0.0
  %1067 = vmatpush1.msra.mxu0 0.0
  %1068 = vmatprep.subr.mxu0 0.0
  %1069 = vmatpush1.msra.mxu0 0.0
  %1070 = vmatprep.subr.mxu0 0.0
  %1071 = vmatpush1.msra.mxu0 0.0
  %1072 = vmatprep.subr.mxu0 0.0
  %1073 = vmatpush1.msra.mxu0 0.0
  %1074 = vmatprep.subr.mxu0 0.0
  %1075 = vmatpush1.msra.mxu0 0.0
  %1076 = vmatprep.subr.mxu0 0.0
  %1077 = vmatpush1.msra.mxu0 0.0
  %1078 = vmatprep.subr.mxu0 0.0
  %1079 = vmatpush1.msra.mxu0 0.0
  %1080 = vmatprep.subr.mxu0 0.0
  %1081 = vmatpush1.msra.mxu0 0.0
  %1082 = vmatprep.subr.mxu0 0.0
  %1083 = vmatpush1.msra.mxu0 0.0
  %1084 = vmatprep.subr.mxu0 0.0
  %1085 = vmatpush1.msra.mxu0 0.0
  %1086 = vmatprep.subr.mxu0 0.0
  %1087 = vmatpush1.msra.mxu0 0.0
  %1088 = vmatprep.subr.mxu0 0.0
  %1089 = vmatpush1.msra.mxu0 0.0
  %1090 = vmatprep.subr.mxu0 0.0
  %1091 = vmatpush1.msra.mxu0 0.0
  %1092 = vmatprep.subr.mxu0 0.0
  %1093 = vmatpush1.msra.mxu0 0.0
  %1094 = vmatprep.subr.mxu0 0.0
  %1095 = vmatpush1.msra.mxu0 0.0
  %1096 = vmatprep.subr.mxu0 0.0
  %1097 = vmatpush1.msra.mxu0 0.0
  %1098 = vmatprep.subr.mxu0 0.0
  %1099 = vmatpush1.msra.mxu0 0.0
  %1100 = vmatprep.subr.mxu0 0.0
  %1101 = vmatpush1.msra.mxu0 0.0
  %1102 = vmatprep.subr.mxu0 0.0
  %1103 = vmatpush1.msra.mxu0 0.0
  %1104 = vmatprep.subr.mxu0 0.0
  %1105 = vmatpush1.msra.mxu0 0.0
  %1106 = vmatprep.subr.mxu0 0.0
  %1107 = vmatpush1.msra.mxu0 0.0
  %1108 = vmatprep.subr.mxu0 0.0
  %1109 = vmatpush1.msra.mxu0 0.0
  %1110 = vmatprep.subr.mxu0 0.0
  %1111 = vmatpush1.msra.mxu0 0.0
  %1112 = vmatprep.subr.mxu0 0.0
  %1113 = vmatpush1.msra.mxu0 0.0
  %1114 = vmatprep.subr.mxu0 0.0
  %1115 = vmatpush1.msra.mxu0 0.0
  %1116 = vmatprep.subr.mxu0 0.0
  %1117 = vmatpush1.msra.mxu0 0.0
  %1118 = vmatprep.subr.mxu0 0.0
  %1119 = vmatpush1.msra.mxu0 0.0
  %1120 = vmatprep.subr.mxu0 0.0
  %1121 = vmatpush1.msra.mxu0 0.0
  %1122 = vmatprep.mubr.f32.mxu0 0.0
  %1123 = vmatmul.mubr.f32.gmra.mrb[0].mxu0 %v1056
  %v1124 = vpop.f32.mrb[0].mxu0
  %v1125 = vadd.f32 0.0, %v1124
  %v1126 = vpop.f32.mrb[0].mxu0
  %1127 = vdwg.mxu0
  %v1128 = vsel %vm947, %v482, 0
  %1130 = vmatprep.subr.mxu0 0.0
  %1131 = vmatpush1.msra.mxu0 %v1050
  %1132 = vmatprep.subr.mxu0 0.0
  %1133 = vmatpush1.msra.mxu0 %v1051
  %1134 = vmatprep.subr.mxu0 0.0
  %1135 = vmatpush1.msra.mxu0 0.0
  %1136 = vmatprep.subr.mxu0 0.0
  %1137 = vmatpush1.msra.mxu0 0.0
  %1138 = vmatprep.subr.mxu0 0.0
  %1139 = vmatpush1.msra.mxu0 0.0
  %1140 = vmatprep.subr.mxu0 0.0
  %1141 = vmatpush1.msra.mxu0 0.0
  %1142 = vmatprep.subr.mxu0 0.0
  %1143 = vmatpush1.msra.mxu0 0.0
  %1144 = vmatprep.subr.mxu0 0.0
  %1145 = vmatpush1.msra.mxu0 0.0
  %1146 = vmatprep.subr.mxu0 0.0
  %1147 = vmatpush1.msra.mxu0 0.0
  %1148 = vmatprep.subr.mxu0 0.0
  %1149 = vmatpush1.msra.mxu0 0.0
  %1150 = vmatprep.subr.mxu0 0.0
  %1151 = vmatpush1.msra.mxu0 0.0
  %1152 = vmatprep.subr.mxu0 0.0
  %1153 = vmatpush1.msra.mxu0 0.0
  %1154 = vmatprep.subr.mxu0 0.0
  %1155 = vmatpush1.msra.mxu0 0.0
  %1156 = vmatprep.subr.mxu0 0.0
  %1157 = vmatpush1.msra.mxu0 0.0
  %1158 = vmatprep.subr.mxu0 0.0
  %1159 = vmatpush1.msra.mxu0 0.0
  %1160 = vmatprep.subr.mxu0 0.0
  %1161 = vmatpush1.msra.mxu0 0.0
  %1162 = vmatprep.subr.mxu0 0.0
  %1163 = vmatpush1.msra.mxu0 0.0
  %1164 = vmatprep.subr.mxu0 0.0
  %1165 = vmatpush1.msra.mxu0 0.0
  %1166 = vmatprep.subr.mxu0 0.0
  %1167 = vmatpush1.msra.mxu0 0.0
  %1168 = vmatprep.subr.mxu0 0.0
  %1169 = vmatpush1.msra.mxu0 0.0
  %1170 = vmatprep.subr.mxu0 0.0
  %1171 = vmatpush1.msra.mxu0 0.0
  %1172 = vmatprep.subr.mxu0 0.0
  %1173 = vmatpush1.msra.mxu0 0.0
  %1174 = vmatprep.subr.mxu0 0.0
  %1175 = vmatpush1.msra.mxu0 0.0
  %1176 = vmatprep.subr.mxu0 0.0
  %1177 = vmatpush1.msra.mxu0 0.0
  %1178 = vmatprep.subr.mxu0 0.0
  %1179 = vmatpush1.msra.mxu0 0.0
  %1180 = vmatprep.subr.mxu0 0.0
  %1181 = vmatpush1.msra.mxu0 0.0
  %1182 = vmatprep.subr.mxu0 0.0
  %1183 = vmatpush1.msra.mxu0 0.0
  %1184 = vmatprep.subr.mxu0 0.0
  %1185 = vmatpush1.msra.mxu0 0.0
  %1186 = vmatprep.subr.mxu0 0.0
  %1187 = vmatpush1.msra.mxu0 0.0
  %1188 = vmatprep.subr.mxu0 0.0
  %1189 = vmatpush1.msra.mxu0 0.0
  %1190 = vmatprep.subr.mxu0 0.0
  %1191 = vmatpush1.msra.mxu0 0.0
  %1192 = vmatprep.subr.mxu0 0.0
  %1193 = vmatpush1.msra.mxu0 0.0
  %1194 = vmatprep.mubr.f32.mxu0 0.0
  %1195 = vmatmul.mubr.f32.gmra.mrb[0].mxu0 %v1128
  %v1196 = vpop.f32.mrb[0].mxu0
  %v1197 = vadd.f32 0.0, %v1196
  %v1198 = vpop.f32.mrb[0].mxu0
  %1199 = vdwg.mxu0
  %v1200 = vsel %vm947, %v484, 0
  %1202 = vmatprep.subr.mxu0 0.0
  %1203 = vmatpush1.msra.mxu0 %v1052
  %1204 = vmatprep.subr.mxu0 0.0
  %1205 = vmatpush1.msra.mxu0 %v1053
  %1206 = vmatprep.subr.mxu0 0.0
  %1207 = vmatpush1.msra.mxu0 0.0
  %1208 = vmatprep.subr.mxu0 0.0
  %1209 = vmatpush1.msra.mxu0 0.0
  %1210 = vmatprep.subr.mxu0 0.0
  %1211 = vmatpush1.msra.mxu0 0.0
  %1212 = vmatprep.subr.mxu0 0.0
  %1213 = vmatpush1.msra.mxu0 0.0
  %1214 = vmatprep.subr.mxu0 0.0
  %1215 = vmatpush1.msra.mxu0 0.0
  %1216 = vmatprep.subr.mxu0 0.0
  %1217 = vmatpush1.msra.mxu0 0.0
  %1218 = vmatprep.subr.mxu0 0.0
  %1219 = vmatpush1.msra.mxu0 0.0
  %1220 = vmatprep.subr.mxu0 0.0
  %1221 = vmatpush1.msra.mxu0 0.0
  %1222 = vmatprep.subr.mxu0 0.0
  %1223 = vmatpush1.msra.mxu0 0.0
  %1224 = vmatprep.subr.mxu0 0.0
  %1225 = vmatpush1.msra.mxu0 0.0
  %1226 = vmatprep.subr.mxu0 0.0
  %1227 = vmatpush1.msra.mxu0 0.0
  %1228 = vmatprep.subr.mxu0 0.0
  %1229 = vmatpush1.msra.mxu0 0.0
  %1230 = vmatprep.subr.mxu0 0.0
  %1231 = vmatpush1.msra.mxu0 0.0
  %1232 = vmatprep.subr.mxu0 0.0
  %1233 = vmatpush1.msra.mxu0 0.0
  %1234 = vmatprep.subr.mxu0 0.0
  %1235 = vmatpush1.msra.mxu0 0.0
  %1236 = vmatprep.subr.mxu0 0.0
  %1237 = vmatpush1.msra.mxu0 0.0
  %1238 = vmatprep.subr.mxu0 0.0
  %1239 = vmatpush1.msra.mxu0 0.0
  %1240 = vmatprep.subr.mxu0 0.0
  %1241 = vmatpush1.msra.mxu0 0.0
  %1242 = vmatprep.subr.mxu0 0.0
  %1243 = vmatpush1.msra.mxu0 0.0
  %1244 = vmatprep.subr.mxu0 0.0
  %1245 = vmatpush1.msra.mxu0 0.0
  %1246 = vmatprep.subr.mxu0 0.0
  %1247 = vmatpush1.msra.mxu0 0.0
  %1248 = vmatprep.subr.mxu0 0.0
  %1249 = vmatpush1.msra.mxu0 0.0
  %1250 = vmatprep.subr.mxu0 0.0
  %1251 = vmatpush1.msra.mxu0 0.0
  %1252 = vmatprep.subr.mxu0 0.0
  %1253 = vmatpush1.msra.mxu0 0.0
  %1254 = vmatprep.subr.mxu0 0.0
  %1255 = vmatpush1.msra.mxu0 0.0
  %1256 = vmatprep.subr.mxu0 0.0
  %1257 = vmatpush1.msra.mxu0 0.0
  %1258 = vmatprep.subr.mxu0 0.0
  %1259 = vmatpush1.msra.mxu0 0.0
  %1260 = vmatprep.subr.mxu0 0.0
  %1261 = vmatpush1.msra.mxu0 0.0
  %1262 = vmatprep.subr.mxu0 0.0
  %1263 = vmatpush1.msra.mxu0 0.0
  %1264 = vmatprep.subr.mxu0 0.0
  %1265 = vmatpush1.msra.mxu0 0.0
  %1266 = vmatprep.mubr.f32.mxu0 0.0
  %1267 = vmatmul.mubr.f32.gmra.mrb[0].mxu0 %v1200
  %v1268 = vpop.f32.mrb[0].mxu0
  %v1269 = vadd.f32 0.0, %v1268
  %v1270 = vpop.f32.mrb[0].mxu0
  %1271 = vdwg.mxu0
  %v1272 = vsel %vm947, %v486, 0
  %1274 = vmatprep.subr.mxu0 0.0
  %1275 = vmatpush1.msra.mxu0 %v1054
  %1276 = vmatprep.subr.mxu0 0.0
  %1277 = vmatpush1.msra.mxu0 %v1055
  %1278 = vmatprep.subr.mxu0 0.0
  %1279 = vmatpush1.msra.mxu0 0.0
  %1280 = vmatprep.subr.mxu0 0.0
  %1281 = vmatpush1.msra.mxu0 0.0
  %1282 = vmatprep.subr.mxu0 0.0
  %1283 = vmatpush1.msra.mxu0 0.0
  %1284 = vmatprep.subr.mxu0 0.0
  %1285 = vmatpush1.msra.mxu0 0.0
  %1286 = vmatprep.subr.mxu0 0.0
  %1287 = vmatpush1.msra.mxu0 0.0
  %1288 = vmatprep.subr.mxu0 0.0
  %1289 = vmatpush1.msra.mxu0 0.0
  %1290 = vmatprep.subr.mxu0 0.0
  %1291 = vmatpush1.msra.mxu0 0.0
  %1292 = vmatprep.subr.mxu0 0.0
  %1293 = vmatpush1.msra.mxu0 0.0
  %1294 = vmatprep.subr.mxu0 0.0
  %1295 = vmatpush1.msra.mxu0 0.0
  %1296 = vmatprep.subr.mxu0 0.0
  %1297 = vmatpush1.msra.mxu0 0.0
  %1298 = vmatprep.subr.mxu0 0.0
  %1299 = vmatpush1.msra.mxu0 0.0
  %1300 = vmatprep.subr.mxu0 0.0
  %1301 = vmatpush1.msra.mxu0 0.0
  %1302 = vmatprep.subr.mxu0 0.0
  %1303 = vmatpush1.msra.mxu0 0.0
  %1304 = vmatprep.subr.mxu0 0.0
  %1305 = vmatpush1.msra.mxu0 0.0
  %1306 = vmatprep.subr.mxu0 0.0
  %1307 = vmatpush1.msra.mxu0 0.0
  %1308 = vmatprep.subr.mxu0 0.0
  %1309 = vmatpush1.msra.mxu0 0.0
  %1310 = vmatprep.subr.mxu0 0.0
  %1311 = vmatpush1.msra.mxu0 0.0
  %1312 = vmatprep.subr.mxu0 0.0
  %1313 = vmatpush1.msra.mxu0 0.0
  %1314 = vmatprep.subr.mxu0 0.0
  %1315 = vmatpush1.msra.mxu0 0.0
  %1316 = vmatprep.subr.mxu0 0.0
  %1317 = vmatpush1.msra.mxu0 0.0
  %1318 = vmatprep.subr.mxu0 0.0
  %1319 = vmatpush1.msra.mxu0 0.0
  %1320 = vmatprep.subr.mxu0 0.0
  %1321 = vmatpush1.msra.mxu0 0.0
  %1322 = vmatprep.subr.mxu0 0.0
  %1323 = vmatpush1.msra.mxu0 0.0
  %1324 = vmatprep.subr.mxu0 0.0
  %1325 = vmatpush1.msra.mxu0 0.0
  %1326 = vmatprep.subr.mxu0 0.0
  %1327 = vmatpush1.msra.mxu0 0.0
  %1328 = vmatprep.subr.mxu0 0.0
  %1329 = vmatpush1.msra.mxu0 0.0
  %1330 = vmatprep.subr.mxu0 0.0
  %1331 = vmatpush1.msra.mxu0 0.0
  %1332 = vmatprep.subr.mxu0 0.0
  %1333 = vmatpush1.msra.mxu0 0.0
  %1334 = vmatprep.subr.mxu0 0.0
  %1335 = vmatpush1.msra.mxu0 0.0
  %1336 = vmatprep.subr.mxu0 0.0
  %1337 = vmatpush1.msra.mxu0 0.0
  %1338 = vmatprep.mubr.f32.mxu0 0.0
  %1339 = vmatmul.mubr.f32.gmra.mrb[0].mxu0 %v1272
  %v1340 = vpop.f32.mrb[0].mxu0
  %v1341 = vadd.f32 0.0, %v1340
  %v1342 = vpop.f32.mrb[0].mxu0
  %1343 = vdwg.mxu0
  %v1345 = vrot.slane %v1197, 4
  %v1348 = vrot.slane %v1341, 4
  %v1350 = vsel %vm25, %v1125, %v1345
  %v1351 = vsel %vm25, %v1269, %v1348
  %v1352 = vld [vmem:[%s1 + $0x50] sm:$0xff]
  %v1353 = vld [vmem:[%s1] sm:$0xff]
  %1355 = vset.pattern.permute.xlu0 32
  %1356 = vperm.xlu0 %1355, %v1353
  %v1357 = vpop.permute.xlu0 %1356
  %v1360 = vsel %vm947, %v1352, 0
  %1362 = vmatprep.subr.mxu0 0.0
  %1363 = vmatpush1.msra.mxu0 %v1350
  %1364 = vmatprep.subr.mxu0 0.0
  %1365 = vmatpush1.msra.mxu0 %v1351
  %1366 = vmatprep.subr.mxu0 0.0
  %1367 = vmatpush1.msra.mxu0 0.0
  %1368 = vmatprep.subr.mxu0 0.0
  %1369 = vmatpush1.msra.mxu0 0.0
  %1370 = vmatprep.subr.mxu0 0.0
  %1371 = vmatpush1.msra.mxu0 0.0
  %1372 = vmatprep.subr.mxu0 0.0
  %1373 = vmatpush1.msra.mxu0 0.0
  %1374 = vmatprep.subr.mxu0 0.0
  %1375 = vmatpush1.msra.mxu0 0.0
  %1376 = vmatprep.subr.mxu0 0.0
  %1377 = vmatpush1.msra.mxu0 0.0
  %1378 = vmatprep.subr.mxu0 0.0
  %1379 = vmatpush1.msra.mxu0 0.0
  %1380 = vmatprep.subr.mxu0 0.0
  %1381 = vmatpush1.msra.mxu0 0.0
  %1382 = vmatprep.subr.mxu0 0.0
  %1383 = vmatpush1.msra.mxu0 0.0
  %1384 = vmatprep.subr.mxu0 0.0
  %1385 = vmatpush1.msra.mxu0 0.0
  %1386 = vmatprep.subr.mxu0 0.0
  %1387 = vmatpush1.msra.mxu0 0.0
  %1388 = vmatprep.subr.mxu0 0.0
  %1389 = vmatpush1.msra.mxu0 0.0
  %1390 = vmatprep.subr.mxu0 0.0
  %1391 = vmatpush1.msra.mxu0 0.0
  %1392 = vmatprep.subr.mxu0 0.0
  %1393 = vmatpush1.msra.mxu0 0.0
  %1394 = vmatprep.subr.mxu0 0.0
  %1395 = vmatpush1.msra.mxu0 0.0
  %1396 = vmatprep.subr.mxu0 0.0
  %1397 = vmatpush1.msra.mxu0 0.0
  %1398 = vmatprep.subr.mxu0 0.0
  %1399 = vmatpush1.msra.mxu0 0.0
  %1400 = vmatprep.subr.mxu0 0.0
  %1401 = vmatpush1.msra.mxu0 0.0
  %1402 = vmatprep.subr.mxu0 0.0
  %1403 = vmatpush1.msra.mxu0 0.0
  %1404 = vmatprep.subr.mxu0 0.0
  %1405 = vmatpush1.msra.mxu0 0.0
  %1406 = vmatprep.subr.mxu0 0.0
  %1407 = vmatpush1.msra.mxu0 0.0
  %1408 = vmatprep.subr.mxu0 0.0
  %1409 = vmatpush1.msra.mxu0 0.0
  %1410 = vmatprep.subr.mxu0 0.0
  %1411 = vmatpush1.msra.mxu0 0.0
  %1412 = vmatprep.subr.mxu0 0.0
  %1413 = vmatpush1.msra.mxu0 0.0
  %1414 = vmatprep.subr.mxu0 0.0
  %1415 = vmatpush1.msra.mxu0 0.0
  %1416 = vmatprep.subr.mxu0 0.0
  %1417 = vmatpush1.msra.mxu0 0.0
  %1418 = vmatprep.subr.mxu0 0.0
  %1419 = vmatpush1.msra.mxu0 0.0
  %1420 = vmatprep.subr.mxu0 0.0
  %1421 = vmatpush1.msra.mxu0 0.0
  %1422 = vmatprep.subr.mxu0 0.0
  %1423 = vmatpush1.msra.mxu0 0.0
  %1424 = vmatprep.subr.mxu0 0.0
  %1425 = vmatpush1.msra.mxu0 0.0
  %1426 = vmatprep.mubr.f32.mxu0 0.0
  %1427 = vmatmul.mubr.f32.gmra.mrb[0].mxu0 %v1360
  %v1428 = vpop.f32.mrb[0].mxu0
  %v1429 = vadd.f32 %v1357, %v1428
  %v1430 = vpop.f32.mrb[0].mxu0
  %1431 = vdwg.mxu0
  %v1432 = vrot.slane %v11, 4
  %1433 = vrot.lane.b32.xlu0 %v1432, 64
  %v1434 = vpop.permute.xlu0 %1433
  %v1436 = vsel %vm25, %v11, %v1434
  %v1437 = vadd.f32 %v1429, %v1436
  %v1438 = vsel %vm947, %v1437, 0.0
  %1439 = vadd.xlane.f32.xlu0 %v1438
  %v1440 = vpop.xlane.xlu0 %1439
  %v1441 = vrcp.pop 16.0
  %v1442 = vmul.f32 %v1440, %v1441
  %v1443 = vsub.f32 %v1437, %v1442
  %v1444 = vmul.f32 %v1443, %v1443
  %v1445 = vsel %vm947, %v1444, 0.0
  %1446 = vadd.xlane.f32.xlu0 %v1445
  %v1447 = vpop.xlane.xlu0 %1446
  %v1448 = vmul.f32 %v1447, %v1441
  %v1449 = vadd.f32 %v1448, 1e-05
  %v1450 = vrsqrt.pop %v1449
  %v1451 = vmul.f32 %v1443, %v1450
  %1452 = vset.pattern.permute.xlu0 33
  %1453 = vperm.xlu0 %1452, %v1353
  %v1454 = vpop.permute.xlu0 %1453
  %v1456 = vmul.f32 %v1451, %v1454
  %1457 = vset.pattern.permute.xlu0 34
  %1458 = vperm.xlu0 %1457, %v1353
  %v1459 = vpop.permute.xlu0 %1458
  %v1461 = vadd.f32 %v1456, %v1459
  %v1462 = vld [vmem:[%s1 + $0x30] sm:$0xff]
  %v1463 = vld [vmem:[%s1 + $0x38] sm:$0xff]
  %v1464 = vld [vmem:[%s1 + $0x40] sm:$0xff]
  %v1465 = vld [vmem:[%s1 + $0x48] sm:$0xff]
  %v1466 = vld [vmem:[%s1] sm:$0xff]
  %v1467 = vld [vmem:[%s1 + $0x8] sm:$0xff]
  %v1468 = vld [vmem:[%s1 + $0x10] sm:$0xff]
  %v1469 = vld [vmem:[%s1 + $0x18] sm:$0xff]
  %1471 = vset.pattern.permute.xlu0 35
  %1472 = vperm.xlu0 %1471, %v1466
  %v1473 = vpop.permute.xlu0 %1472
  %1476 = vset.pattern.permute.xlu0 35
  %1477 = vperm.xlu0 %1476, %v1467
  %v1478 = vpop.permute.xlu0 %1477
  %1481 = vset.pattern.permute.xlu0 35
  %1482 = vperm.xlu0 %1481, %v1468
  %v1483 = vpop.permute.xlu0 %1482
  %1486 = vset.pattern.permute.xlu0 35
  %1487 = vperm.xlu0 %1486, %v1469
  %v1488 = vpop.permute.xlu0 %1487
  %vm1490 = vcmask 64512
  %v1492 = vsel %vm1490, %v1462, 0
  %v1495 = vsel %vm1490, %v1463, 0
  %v1498 = vsel %vm1490, %v1464, 0
  %v1501 = vsel %vm1490, %v1465, 0
  %1503 = vmatprep.subr.mxu0 0.0
  %1504 = vmatpush1.msra.mxu0 %v1461
  %1505 = vmatprep.subr.mxu0 0.0
  %1506 = vmatpush1.msra.mxu0 0.0
  %1507 = vmatprep.subr.mxu0 0.0
  %1508 = vmatpush1.msra.mxu0 0.0
  %1509 = vmatprep.subr.mxu0 0.0
  %1510 = vmatpush1.msra.mxu0 0.0
  %1511 = vmatprep.subr.mxu0 0.0
  %1512 = vmatpush1.msra.mxu0 0.0
  %1513 = vmatprep.subr.mxu0 0.0
  %1514 = vmatpush1.msra.mxu0 0.0
  %1515 = vmatprep.subr.mxu0 0.0
  %1516 = vmatpush1.msra.mxu0 0.0
  %1517 = vmatprep.subr.mxu0 0.0
  %1518 = vmatpush1.msra.mxu0 0.0
  %1519 = vmatprep.subr.mxu0 0.0
  %1520 = vmatpush1.msra.mxu0 0.0
  %1521 = vmatprep.subr.mxu0 0.0
  %1522 = vmatpush1.msra.mxu0 0.0
  %1523 = vmatprep.subr.mxu0 0.0
  %1524 = vmatpush1.msra.mxu0 0.0
  %1525 = vmatprep.subr.mxu0 0.0
  %1526 = vmatpush1.msra.mxu0 0.0
  %1527 = vmatprep.subr.mxu0 0.0
  %1528 = vmatpush1.msra.mxu0 0.0
  %1529 = vmatprep.subr.mxu0 0.0
  %1530 = vmatpush1.msra.mxu0 0.0
  %1531 = vmatprep.subr.mxu0 0.0
  %1532 = vmatpush1.msra.mxu0 0.0
  %1533 = vmatprep.subr.mxu0 0.0
  %1534 = vmatpush1.msra.mxu0 0.0
  %1535 = vmatprep.subr.mxu0 0.0
  %1536 = vmatpush1.msra.mxu0 0.0
  %1537 = vmatprep.subr.mxu0 0.0
  %1538 = vmatpush1.msra.mxu0 0.0
  %1539 = vmatprep.subr.mxu0 0.0
  %1540 = vmatpush1.msra.mxu0 0.0
  %1541 = vmatprep.subr.mxu0 0.0
  %1542 = vmatpush1.msra.mxu0 0.0
  %1543 = vmatprep.subr.mxu0 0.0
  %1544 = vmatpush1.msra.mxu0 0.0
  %1545 = vmatprep.subr.mxu0 0.0
  %1546 = vmatpush1.msra.mxu0 0.0
  %1547 = vmatprep.subr.mxu0 0.0
  %1548 = vmatpush1.msra.mxu0 0.0
  %1549 = vmatprep.subr.mxu0 0.0
  %1550 = vmatpush1.msra.mxu0 0.0
  %1551 = vmatprep.subr.mxu0 0.0
  %1552 = vmatpush1.msra.mxu0 0.0
  %1553 = vmatprep.subr.mxu0 0.0
  %1554 = vmatpush1.msra.mxu0 0.0
  %1555 = vmatprep.subr.mxu0 0.0
  %1556 = vmatpush1.msra.mxu0 0.0
  %1557 = vmatprep.subr.mxu0 0.0
  %1558 = vmatpush1.msra.mxu0 0.0
  %1559 = vmatprep.subr.mxu0 0.0
  %1560 = vmatpush1.msra.mxu0 0.0
  %1561 = vmatprep.subr.mxu0 0.0
  %1562 = vmatpush1.msra.mxu0 0.0
  %1563 = vmatprep.subr.mxu0 0.0
  %1564 = vmatpush1.msra.mxu0 0.0
  %1565 = vmatprep.subr.mxu0 0.0
  %1566 = vmatpush1.msra.mxu0 0.0
  %1567 = vmatprep.mubr.f32.mxu0 0.0
  %1568 = vmatmul.mubr.f32.gmra.mrb[0].mxu0 %v1492
  %v1569 = vpop.f32.mrb[0].mxu0
  %v1570 = vadd.f32 %v1473, %v1569
  %v1571 = vpop.f32.mrb[0].mxu0
  %1572 = vmatprep.mubr.f32.mxu0 0.0
  %1573 = vmatmul.mubr.f32.gmra.mrb[0].mxu0 %v1495
  %v1574 = vpop.f32.mrb[0].mxu0
  %v1575 = vadd.f32 %v1478, %v1574
  %v1576 = vpop.f32.mrb[0].mxu0
  %1577 = vmatprep.mubr.f32.mxu0 0.0
  %1578 = vmatmul.mubr.f32.gmra.mrb[0].mxu0 %v1498
  %v1579 = vpop.f32.mrb[0].mxu0
  %v1580 = vadd.f32 %v1483, %v1579
  %v1581 = vpop.f32.mrb[0].mxu0
  %1582 = vmatprep.mubr.f32.mxu0 0.0
  %1583 = vmatmul.mubr.f32.gmra.mrb[0].mxu0 %v1501
  %v1584 = vpop.f32.mrb[0].mxu0
  %v1585 = vadd.f32 %v1488, %v1584
  %v1586 = vpop.f32.mrb[0].mxu0
  %1587 = vdwg.mxu0
  %v1588 = vmax.f32 %v1570, 0.0
  %v1589 = vmax.f32 %v1575, 0.0
  %v1590 = vmax.f32 %v1580, 0.0
  %v1591 = vmax.f32 %v1585, 0.0
  %v1592 = vld [vmem:[%s1 + $0x58] sm:$0xff]
  %1593 = vset.pattern.permute.xlu0 36
  %1594 = vperm.xlu0 %1593, %v1353
  %v1595 = vpop.permute.xlu0 %1594
  %vm1597 = vcmask 261120
  %v1599 = vsel %vm1597, %v1592, 0
  %1601 = vmatprep.subr.mxu0 0.0
  %1602 = vmatpush1.msra.mxu0 %v1588
  %1603 = vmatprep.subr.mxu0 0.0
  %1604 = vmatpush1.msra.mxu0 %v1589
  %1605 = vmatprep.subr.mxu0 0.0
  %1606 = vmatpush1.msra.mxu0 %v1590
  %1607 = vmatprep.subr.mxu0 0.0
  %1608 = vmatpush1.msra.mxu0 %v1591
  %1609 = vmatprep.subr.mxu0 0.0
  %1610 = vmatpush1.msra.mxu0 0.0
  %1611 = vmatprep.subr.mxu0 0.0
  %1612 = vmatpush1.msra.mxu0 0.0
  %1613 = vmatprep.subr.mxu0 0.0
  %1614 = vmatpush1.msra.mxu0 0.0
  %1615 = vmatprep.subr.mxu0 0.0
  %1616 = vmatpush1.msra.mxu0 0.0
  %1617 = vmatprep.subr.mxu0 0.0
  %1618 = vmatpush1.msra.mxu0 0.0
  %1619 = vmatprep.subr.mxu0 0.0
  %1620 = vmatpush1.msra.mxu0 0.0
  %1621 = vmatprep.subr.mxu0 0.0
  %1622 = vmatpush1.msra.mxu0 0.0
  %1623 = vmatprep.subr.mxu0 0.0
  %1624 = vmatpush1.msra.mxu0 0.0
  %1625 = vmatprep.subr.mxu0 0.0
  %1626 = vmatpush1.msra.mxu0 0.0
  %1627 = vmatprep.subr.mxu0 0.0
  %1628 = vmatpush1.msra.mxu0 0.0
  %1629 = vmatprep.subr.mxu0 0.0
  %1630 = vmatpush1.msra.mxu0 0.0
  %1631 = vmatprep.subr.mxu0 0.0
  %1632 = vmatpush1.msra.mxu0 0.0
  %1633 = vmatprep.subr.mxu0 0.0
  %1634 = vmatpush1.msra.mxu0 0.0
  %1635 = vmatprep.subr.mxu0 0.0
  %1636 = vmatpush1.msra.mxu0 0.0
  %1637 = vmatprep.subr.mxu0 0.0
  %1638 = vmatpush1.msra.mxu0 0.0
  %1639 = vmatprep.subr.mxu0 0.0
  %1640 = vmatpush1.msra.mxu0 0.0
  %1641 = vmatprep.subr.mxu0 0.0
  %1642 = vmatpush1.msra.mxu0 0.0
  %1643 = vmatprep.subr.mxu0 0.0
  %1644 = vmatpush1.msra.mxu0 0.0
  %1645 = vmatprep.subr.mxu0 0.0
  %1646 = vmatpush1.msra.mxu0 0.0
  %1647 = vmatprep.subr.mxu0 0.0
  %1648 = vmatpush1.msra.mxu0 0.0
  %1649 = vmatprep.subr.mxu0 0.0
  %1650 = vmatpush1.msra.mxu0 0.0
  %1651 = vmatprep.subr.mxu0 0.0
  %1652 = vmatpush1.msra.mxu0 0.0
  %1653 = vmatprep.subr.mxu0 0.0
  %1654 = vmatpush1.msra.mxu0 0.0
  %1655 = vmatprep.subr.mxu0 0.0
  %1656 = vmatpush1.msra.mxu0 0.0
  %1657 = vmatprep.subr.mxu0 0.0
  %1658 = vmatpush1.msra.mxu0 0.0
  %1659 = vmatprep.subr.mxu0 0.0
  %1660 = vmatpush1.msra.mxu0 0.0
  %1661 = vmatprep.subr.mxu0 0.0
  %1662 = vmatpush1.msra.mxu0 0.0
  %1663 = vmatprep.subr.mxu0 0.0
  %1664 = vmatpush1.msra.mxu0 0.0
  %1665 = vmatprep.mubr.f32.mxu0 0.0
  %1666 = vmatmul.mubr.f32.gmra.mrb[0].mxu0 %v1599
  %v1667 = vpop.f32.mrb[0].mxu0
  %v1668 = vadd.f32 %v1595, %v1667
  %v1669 = vpop.f32.mrb[0].mxu0
  %1670 = vdwg.mxu0
  %v1671 = vadd.f32 %v1668, %v1461
  %v1672 = vsel %vm947, %v1671, 0.0
  %1673 = vadd.xlane.f32.xlu0 %v1672
  %v1674 = vpop.xlane.xlu0 %1673
  %v1675 = vmul.f32 %v1674, %v1441
  %v1676 = vsub.f32 %v1671, %v1675
  %v1677 = vmul.f32 %v1676, %v1676
  %v1678 = vsel %vm947, %v1677, 0.0
  %1679 = vadd.xlane.f32.xlu0 %v1678
  %v1680 = vpop.xlane.xlu0 %1679
  %v1681 = vmul.f32 %v1680, %v1441
  %v1682 = vadd.f32 %v1681, 1e-05
  %v1683 = vrsqrt.pop %v1682
  %v1684 = vmul.f32 %v1676, %v1683
  %1685 = vset.pattern.permute.xlu0 37
  %1686 = vperm.xlu0 %1685, %v1353
  %v1687 = vpop.permute.xlu0 %1686
  %v1689 = vmul.f32 %v1684, %v1687
  %1690 = vset.pattern.permute.xlu0 38
  %1691 = vperm.xlu0 %1690, %v1353
  %v1692 = vpop.permute.xlu0 %1691
  %v1694 = vadd.f32 %v1689, %v1692
  %1696 = vrot.lane.b32.xlu0 %v1694, 16
  %v1697 = vpop.permute.xlu0 %1696
  %1699 = vrot.lane.b32.xlu0 %v1694, 32
  %v1700 = vpop.permute.xlu0 %1699
  %1702 = vrot.lane.b32.xlu0 %v1694, 48
  %v1703 = vpop.permute.xlu0 %1702
  %1705 = vrot.lane.b32.xlu0 %v1694, 64
  %v1706 = vpop.permute.xlu0 %1705
  %1708 = vrot.lane.b32.xlu0 %v1694, 80
  %v1709 = vpop.permute.xlu0 %1708
  %1711 = vrot.lane.b32.xlu0 %v1694, 96
  %v1712 = vpop.permute.xlu0 %1711
  %1714 = vrot.lane.b32.xlu0 %v1694, 112
  %v1715 = vpop.permute.xlu0 %1714
  %v1717 = vsel %vm947, %v1694, %v1697
  %v1718 = vsel %vm1597, %v1717, %v1700
  %vm1719 = vcmask 392192
  %v1720 = vsel %vm1719, %v1718, %v1703
  %vm1721 = vcmask 523264
  %v1722 = vsel %vm1721, %v1720, %v1706
  %vm1723 = vcmask 654336
  %v1724 = vsel %vm1723, %v1722, %v1709
  %vm1725 = vcmask 785408
  %v1726 = vsel %vm1725, %v1724, %v1712
  %vm1727 = vcmask 916480
  %v1728 = vsel %vm1727, %v1726, %v1715
  %v1729 = vlaneseq
  %v1730 = vand.u32 %v1729, 127
  %v1731 = vlaneseq
  %v1732 = vshrl.u32 %v1731, 7
  %v1733 = vmul.u32 %v1732, 16
  %vm1734 = vcmp.ge.s32.totalorder %v1730, %v1733
  %v1735 = vadd.s32 %v1732, 1
  %v1736 = vmul.u32 %v1735, 16
  %vm1737 = vcmp.lt.s32.totalorder %v1730, %v1736
  %vm1738 = vmand %vm1734, %vm1737
  %v1739 = vsel %vm1738, %v1728, 0.0
  %v1740 = vrot.slane %v1739, 4
  %v1741 = vadd.f32 %v1739, %v1740
  %v1742 = vrot.slane %v1741, 2
  %v1743 = vadd.f32 %v1741, %v1742
  %v1744 = vrot.slane %v1743, 1
  %v1745 = vadd.f32 %v1743, %v1744
  %1746 = vst [vmem:[%s2] sm:$0x1] %v1745
  // Predicated region
  $region10: #{ddsct_block.1} parent=0 // pred_check
    _
  $region11: #{ddsct_block.1} parent=0 // pred_check_branch
    %1748 = sbr.rel (0) target = $region13
  $region12: #{ddsct_block.1} parent=0 // pred_region
    _
  $region13: #{ddsct_block.1} parent=0 // pred_fallthru
    _
  // Predicated region
  $region14: #{ddsct_block.1} parent=0 // pred_check
    _
  $region15: #{ddsct_block.1} parent=0 // pred_check_branch
    %1750 = sbr.rel (0) target = $region17
  $region16: #{ddsct_block.1} parent=0 // pred_region
    _
  $region17: #{ddsct_block.1} parent=0 // pred_fallthru
    _

</llo_original>
